<compile_context>
chip_gen: v6e
topology: v6e:2x2x1
jax: 0.10.0
libtpu: 0.0.40
codegen_flags: <defaults>
</compile_context>

<pallas_src>
import functools

import jax
import jax.numpy as jnp
import numpy as np
from jax import lax
from jax.experimental import pallas as pl
from jax.experimental.pallas import tpu as pltpu

BN_EPS = 1e-5
LANES = 128                        # vreg lane width: channel / class axes padded to this
VMEM_LIMIT = 32 * 1024 * 1024      # scoped-VMEM cap, safe on v5e/v6e/v7x (keep <=48MB on v7x)


def _round_up(x, m):
    return (x + m - 1) // m * m


def _pick_tile_m(m, target):
    """Largest multiple of 8 that divides m and is <= target, so the conv output
    needs no M padding and its reshape to (B, Ho, 2, Wp, C) stays a bitcast."""
    assert m % 8 == 0, m
    t = max(8, min(target, m) // 8 * 8)
    while m % t:
        t -= 8
    return t


# ---------------------------------------------------------------------------
# Kernel 1: conv (matmul over im2col patches, BN scale folded into weights)
#           + bias + ReLU, bf16 writeback, tiled over M = B*Ho*Wo
# ---------------------------------------------------------------------------
def _conv_bn_relu_kernel(p_ref, w_ref, bias_ref, o_ref):
    acc = jnp.dot(p_ref[...], w_ref[...], preferred_element_type=jnp.float32)
    o_ref[...] = jnp.maximum(acc + bias_ref[...], 0.0).astype(o_ref.dtype)


def conv_bn_relu(patches, wmat, bias, tile_m):
    m, k = patches.shape
    n = wmat.shape[1]
    return pl.pallas_call(
        _conv_bn_relu_kernel,
        grid=(m // tile_m,),
        in_specs=[
            pl.BlockSpec((tile_m, k), lambda i: (i, 0)),   # streamed patch rows (true K)
            pl.BlockSpec((k, n), lambda i: (0, 0)),        # folded conv*BN weights: resident
            pl.BlockSpec((1, n), lambda i: (0, 0)),        # folded BN bias: resident
        ],
        out_specs=pl.BlockSpec((tile_m, n), lambda i: (i, 0)),
        out_shape=jax.ShapeDtypeStruct((m, n), jnp.bfloat16),
        compiler_params=pltpu.CompilerParams(
            dimension_semantics=("parallel",),
            vmem_limit_bytes=VMEM_LIMIT),
    )(patches, wmat, bias)


# ---------------------------------------------------------------------------
# Kernel 2: fused MaxPool2d(3, 2, 1) + channel mean / unbiased std (per image)
# ---------------------------------------------------------------------------
def _pool_stats_kernel(y_ref, std_ref, mean_ref, *, c_real, hp, wp):
    # y_ref: (1, Ho, 2, Wp, Cp) bf16, W-parity-split conv+BN+ReLU feature.
    # Activations are >= 0, so MaxPool's -inf padding can be replaced by 0 and
    # out-of-range taps simply dropped.
    y = y_ref[0]                                   # (Ho, 2, Wp, Cp)
    ev = y[:, 0].astype(jnp.float32)               # cols 2j       (Ho, Wp, Cp)
    od = y[:, 1].astype(jnp.float32)               # cols 2j+1
    # 3-tap max along W at stride 2: taps {2j-1, 2j, 2j+1} = {od[j-1], ev[j], od[j]}
    od_prev = pltpu.roll(od, shift=1, axis=1)      # od[j-1] (wraps at j=0)
    col0 = lax.broadcasted_iota(jnp.int32, od.shape, 1) == 0
    od_prev = jnp.where(col0, 0.0, od_prev)        # drop the wrapped tap (padding)
    rw = jnp.maximum(jnp.maximum(od_prev, ev), od)                  # (Ho, Wp, Cp)
    # 3-tap max along H at stride 2 via a free outer-dim parity split.
    cp = rw.shape[-1]
    r2 = rw.reshape(hp, 2, wp, cp)
    ev_r = r2[:, 0]                                # rows 2i
    od_r = r2[:, 1]                                # rows 2i+1
    od_r_prev = jnp.concatenate(                   # rows 2i-1 (padding -> 0 at i=0)
        [jnp.zeros_like(od_r[:1]), od_r[:-1]], axis=0)
    fm = jnp.maximum(jnp.maximum(od_r_prev, ev_r), od_r)            # (Hp, Wp, Cp)
    # Channel statistics; padded channels (index >= c_real) are masked out and
    # the unbiased (ddof=1) variance uses the numerically safe two-pass formula.
    valid = lax.broadcasted_iota(jnp.int32, fm.shape, 2) < c_real
    fm_v = jnp.where(valid, fm, 0.0)
    mean_k = jnp.sum(fm_v, axis=-1, keepdims=True) * (1.0 / c_real)     # (Hp,Wp,1)
    diff = jnp.where(valid, fm - mean_k, 0.0)
    var_k = jnp.sum(diff * diff, axis=-1, keepdims=True) * (1.0 / (c_real - 1))
    std_ref[0] = jnp.sqrt(var_k)
    mean_ref[0] = mean_k


def maxpool_channel_stats(y5, c_real, hp, wp):
    b, ho, _, _, cp = y5.shape
    kern = functools.partial(_pool_stats_kernel, c_real=c_real, hp=hp, wp=wp)
    # NOTE: (1, hp, wp, 1) stats blocks are tiny; kept keepdims for robust lowering.
    out_sds = jax.ShapeDtypeStruct((b, hp, wp, 1), jnp.float32)
    return pl.pallas_call(
        kern,
        grid=(b,),
        in_specs=[pl.BlockSpec((1, ho, 2, wp, cp), lambda i: (i, 0, 0, 0, 0))],
        out_specs=(
            pl.BlockSpec((1, hp, wp, 1), lambda i: (i, 0, 0, 0)),
            pl.BlockSpec((1, hp, wp, 1), lambda i: (i, 0, 0, 0)),
        ),
        out_shape=(out_sds, out_sds),
        compiler_params=pltpu.CompilerParams(
            dimension_semantics=("parallel",),
            vmem_limit_bytes=VMEM_LIMIT),
    )(y5)


# ---------------------------------------------------------------------------
# Kernel 3: Linear -> ReLU -> Linear head (feature = cat([std, mean]) split so
# no in-kernel concatenate is needed: feature @ W1.T == std@W1s + mean@W1m)
# ---------------------------------------------------------------------------
def _head_kernel(std_ref, mean_ref, w1s_ref, w1m_ref, b1_ref, w2_ref, b2_ref, o_ref):
    s = std_ref[...].astype(jnp.bfloat16)
    m = mean_ref[...].astype(jnp.bfloat16)
    h = (jnp.dot(s, w1s_ref[...], preferred_element_type=jnp.float32)
         + jnp.dot(m, w1m_ref[...], preferred_element_type=jnp.float32)
         + b1_ref[...])
    h = jnp.maximum(h, 0.0)
    o_ref[...] = (jnp.dot(h.astype(jnp.bfloat16), w2_ref[...],
                          preferred_element_type=jnp.float32) + b2_ref[...])


def _full_spec(shape):
    n = len(shape)
    return pl.BlockSpec(shape, lambda i, _n=n: (0,) * _n)


def head(std_f, mean_f, w1s, w1m, b1, w2, b2):
    b, hw = std_f.shape
    hid_p = w1s.shape[1]
    ncp = w2.shape[1]
    return pl.pallas_call(
        _head_kernel,
        grid=(1,),
        in_specs=[_full_spec((b, hw)), _full_spec((b, hw)),
                  _full_spec((hw, hid_p)), _full_spec((hw, hid_p)),
                  _full_spec((1, hid_p)),
                  _full_spec((hid_p, ncp)), _full_spec((1, ncp))],
        out_specs=_full_spec((b, ncp)),
        out_shape=jax.ShapeDtypeStruct((b, ncp), jnp.float32),
        compiler_params=pltpu.CompilerParams(
            dimension_semantics=("arbitrary",),
            vmem_limit_bytes=VMEM_LIMIT),
    )(std_f, mean_f, w1s, w1m, b1, w2, b2)


# ---------------------------------------------------------------------------
# Glue: im2col (parity-ordered rows) / parameter plumbing (plain JAX)
# ---------------------------------------------------------------------------
def _im2col_parity(x, kh, kw, stride, pad):
    """im2col whose row order is (b, ho, wo-parity, wo//2) so the conv output
    reshapes to (B, Ho, 2, Wp, C) as a pure bitcast for the fused pool kernel."""
    B, C, H, W = x.shape
    xp = jnp.pad(x, ((0, 0), (0, 0), (pad, pad), (pad, pad)))
    Ho = (H + 2 * pad - kh) // stride + 1
    Wo = (W + 2 * pad - kw) // stride + 1
    assert Wo % 2 == 0
    cols = [xp[:, :, i:i + stride * Ho:stride, j:j + stride * Wo:stride]
            for i in range(kh) for j in range(kw)]
    p = jnp.stack(cols, axis=0).reshape(kh, kw, B, C, Ho, Wo)
    p = p.transpose(2, 4, 5, 3, 0, 1)                    # (B, Ho, Wo, C, kh, kw)
    K = C * kh * kw
    p = p.reshape(B, Ho, Wo // 2, 2, K)                  # wo = 2*wp + parity
    p = p.transpose(0, 1, 3, 2, 4)                       # (B, Ho, 2, Wp, K)
    return p.reshape(B * Ho * Wo, K), Ho, Wo


@functools.partial(jax.jit, static_argnames=("tile_m",))
def static_heatmap_classifier_forward(img, params, tile_m=512):
    # tile_m: conv-matmul rows per grid step; 512-1024 sits near the HBM roofline
    # while each double-buffered operand stays a few hundred KiB of VMEM.
    B, Cin, H, W = img.shape
    conv_w = params["conv_w"]
    Cout = conv_w.shape[0]
    assert Cout > 1, "unbiased std needs at least 2 channels"
    assert Cout <= LANES

    # --- stem: Conv2d(Cin, Cout, 7, stride=2, padding=3, bias=False) + BN + ReLU
    patches, Ho, Wo = _im2col_parity(img, 7, 7, 2, 3)
    M, K = patches.shape
    tm = _pick_tile_m(M, tile_m)
    patches_b = patches.astype(jnp.bfloat16)              # true K: no HBM K padding
    scale = params["bn_gamma"] / jnp.sqrt(params["bn_var"] + BN_EPS)
    bias = params["bn_beta"] - params["bn_mean"] * scale
    wmat = (conv_w.reshape(Cout, -1) * scale[:, None]).T   # BN scale folded, (K, Cout)
    wmat_p = jnp.pad(wmat, ((0, 0), (0, LANES - Cout))).astype(jnp.bfloat16)
    bias_p = jnp.pad(bias, (0, LANES - Cout))[None, :].astype(jnp.float32)
    y = conv_bn_relu(patches_b, wmat_p, bias_p, tm)        # (M, 128) bf16

    # --- fused MaxPool2d(3, 2, 1) + channel std/mean (no host pad / parity copy)
    assert Ho % 2 == 0 and Wo % 2 == 0
    Hp, Wp = Ho // 2, Wo // 2
    y5 = y.reshape(B, Ho, 2, Wp, LANES)                    # bitcast: W-parity baked in
    std4, mean4 = maxpool_channel_stats(y5, Cout, Hp, Wp)
    std_f = std4.reshape(B, Hp * Wp)
    mean_f = mean4.reshape(B, Hp * Wp)

    # --- head: Linear(2*Hp*Wp, hidden) -> ReLU -> Linear(hidden, num_classes)
    HW = Hp * Wp
    w1 = params["fc1_w"]                                   # torch layout (out, in)
    hid = w1.shape[0]
    hid_p = _round_up(hid, LANES)                          # lane-align hidden dim
    w1s = jnp.pad(w1[:, :HW].T, ((0, 0), (0, hid_p - hid))).astype(jnp.bfloat16)
    w1m = jnp.pad(w1[:, HW:].T, ((0, 0), (0, hid_p - hid))).astype(jnp.bfloat16)
    b1 = jnp.pad(params["fc1_b"], (0, hid_p - hid))[None, :].astype(jnp.float32)
    w2 = params["fc2_w"].T                                 # (hidden, num_classes)
    NC = w2.shape[1]
    ncp = _round_up(NC, LANES)                             # lane-dense final store
    w2_p = jnp.pad(w2, ((0, hid_p - hid), (0, ncp - NC))).astype(jnp.bfloat16)
    b2_p = jnp.pad(params["fc2_b"], (0, ncp - NC))[None, :].astype(jnp.float32)
    out = head(std_f, mean_f, w1s, w1m, b1, w2_p, b2_p)
    return out[:, :NC]


# ---------------------------------------------------------------------------
# Pure-JAX reference (correctness check) and deterministic init
# ---------------------------------------------------------------------------
def reference_forward(img, params):
    hp = jax.lax.Precision.HIGHEST
    y = jax.lax.conv_general_dilated(
        img, params["conv_w"], window_strides=(2, 2), padding=((3, 3), (3, 3)),
        dimension_numbers=("NCHW", "OIHW", "NCHW"), precision=hp)
    scale = params["bn_gamma"] / jnp.sqrt(params["bn_var"] + BN_EPS)
    bias = params["bn_beta"] - params["bn_mean"] * scale
    y = jnp.maximum(y * scale[None, :, None, None] + bias[None, :, None, None], 0.0)
    fmap = jax.lax.reduce_window(y, -jnp.inf, jax.lax.max,
                                 (1, 1, 3, 3), (1, 1, 2, 2),
                                 ((0, 0), (0, 0), (1, 1), (1, 1)))
    fstd = jnp.std(fmap, axis=1, ddof=1)
    fmean = jnp.mean(fmap, axis=1)
    feature = jnp.concatenate([fstd, fmean], axis=1).reshape(img.shape[0], -1)
    h = jnp.maximum(
        jnp.dot(feature, params["fc1_w"].T, precision=hp) + params["fc1_b"], 0.0)
    return jnp.dot(h, params["fc2_w"].T, precision=hp) + params["fc2_b"]


def init_params(key, cin, cout, hw, hidden, num_classes):
    ks = jax.random.split(key, 9)
    return {
        "conv_w":   jax.random.normal(ks[0], (cout, cin, 7, 7), jnp.float32) * 0.1,
        "bn_gamma": jax.random.uniform(ks[1], (cout,), jnp.float32, 0.5, 1.5),
        "bn_beta":  jax.random.normal(ks[2], (cout,), jnp.float32) * 0.1,
        "bn_mean":  jax.random.normal(ks[3], (cout,), jnp.float32) * 0.1,
        "bn_var":   jax.random.uniform(ks[4], (cout,), jnp.float32, 0.5, 1.5),
        "fc1_w":    jax.random.normal(ks[5], (hidden, 2 * hw), jnp.float32) * 0.1,
        "fc1_b":    jax.random.normal(ks[6], (hidden,), jnp.float32) * 0.05,
        "fc2_w":    jax.random.normal(ks[7], (num_classes, hidden), jnp.float32) * 0.2,
        "fc2_b":    jax.random.normal(ks[8], (num_classes,), jnp.float32) * 0.05,
    }


if __name__ == "__main__":
    B, CIN, H, W = 2, 3, 32, 32           # small stand-in for 3x224x224
    COUT = 8                              # stand-in for the 64-channel stem
    NUM_CLASSES = 5
    HIDDEN = 64
    # stem: conv s2 -> 16x16, maxpool s2 -> 8x8 => feature dim 2*8*8 = 128
    HW = (W // 4) * (H // 4)

    key = jax.random.PRNGKey(0)
    k_img, k_par = jax.random.split(key)
    img = jax.random.normal(k_img, (B, CIN, H, W), jnp.float32)
    params = init_params(k_par, CIN, COUT, HW, HIDDEN, NUM_CLASSES)

    out = static_heatmap_classifier_forward(img, params)
    out = jax.block_until_ready(out)
    ref = jax.block_until_ready(reference_forward(img, params))

    assert out.shape == (B, NUM_CLASSES), out.shape
    # bf16 weights / bf16 feature-map storage vs f32 HIGHEST reference.
    np.testing.assert_allclose(np.asarray(out), np.asarray(ref),
                               rtol=5e-2, atol=5e-2)
    print("KERNEL_OK")
</pallas_src>

<mosaic_0001>
module attributes {stable_mosaic.version = 11 : i64} {
  func.func @_conv_bn_relu_kernel(%arg0: i32, %arg1: memref<512x147xbf16, #tpu.memory_space<vmem>>, %arg2: memref<147x128xbf16, #tpu.memory_space<vmem>>, %arg3: memref<1x128xf32, #tpu.memory_space<vmem>>, %arg4: memref<512x128xbf16, #tpu.memory_space<vmem>>) attributes {dimension_semantics = [#tpu.dimension_semantics<parallel>], iteration_bounds = array<i64: 1>, scalar_prefetch = 0 : i64, scratch_operands = 0 : i64, tpu.core_type = #tpu.core_type<tc>, window_params = [{transform_indices = @transform_0, window_bounds = array<i64: 512, 147>}, {pipeline_mode = #tpu.pipeline_mode<synchronous>, transform_indices = @transform_1, window_bounds = array<i64: 147, 128>}, {pipeline_mode = #tpu.pipeline_mode<synchronous>, transform_indices = @transform_2, window_bounds = array<i64: 1, 128>}, {transform_indices = @transform_3, window_bounds = array<i64: 512, 128>}]} {
    %c0 = arith.constant 0 : index
    %c0_0 = arith.constant 0 : index
    %0 = vector.load %arg1[%c0, %c0_0] : memref<512x147xbf16, #tpu.memory_space<vmem>>, vector<512x147xbf16>
    %c0_1 = arith.constant 0 : index
    %c0_2 = arith.constant 0 : index
    %1 = vector.load %arg2[%c0_1, %c0_2] : memref<147x128xbf16, #tpu.memory_space<vmem>>, vector<147x128xbf16>
    %cst = arith.constant dense<0.000000e+00> : vector<512x128xf32>
    %2 = tpu.matmul %0, %1, %cst {dimension_numbers = #tpu.dot_dimension_numbers<[1], [0], [0], [1], [0, 0, 1, 1], [], []>} : vector<512x147xbf16>, vector<147x128xbf16>, vector<512x128xf32> -> vector<512x128xf32>
    %c0_3 = arith.constant 0 : index
    %c0_4 = arith.constant 0 : index
    %3 = vector.load %arg3[%c0_3, %c0_4] : memref<1x128xf32, #tpu.memory_space<vmem>>, vector<1x128xf32>
    %4 = vector.broadcast %3 : vector<1x128xf32> to vector<512x128xf32>
    %5 = arith.addf %2, %4 : vector<512x128xf32>
    %cst_5 = arith.constant 0.000000e+00 : f32
    %6 = vector.broadcast %cst_5 : f32 to vector<512x128xf32>
    %7 = arith.maximumf %5, %6 : vector<512x128xf32>
    %8 = arith.truncf %7 : vector<512x128xf32> to vector<512x128xbf16>
    %c0_6 = arith.constant 0 : index
    %c0_7 = arith.constant 0 : index
    %9 = vector.load %arg4[%c0_6, %c0_7] : memref<512x128xbf16, #tpu.memory_space<vmem>>, vector<512x128xbf16>
    tpu.vector_store %arg4[%c0_6, %c0_7], %8 {strides = array<i32>} : memref<512x128xbf16, #tpu.memory_space<vmem>>, vector<512x128xbf16>,
    return
  }
  func.func @transform_0(%arg0: i32) -> (i32, i32) {
    %c0_i32 = arith.constant 0 : i32
    %c0_i32_0 = arith.constant 0 : i32
    return %arg0, %c0_i32 : i32, i32
  }
  func.func @transform_1(%arg0: i32) -> (i32, i32) {
    %c0_i32 = arith.constant 0 : i32
    %c0_i32_0 = arith.constant 0 : i32
    %c0_i32_1 = arith.constant 0 : i32
    return %c0_i32, %c0_i32_0 : i32, i32
  }
  func.func @transform_2(%arg0: i32) -> (i32, i32) {
    %c0_i32 = arith.constant 0 : i32
    %c0_i32_0 = arith.constant 0 : i32
    %c0_i32_1 = arith.constant 0 : i32
    return %c0_i32, %c0_i32_0 : i32, i32
  }
  func.func @transform_3(%arg0: i32) -> (i32, i32) {
    %c0_i32 = arith.constant 0 : i32
    %c0_i32_0 = arith.constant 0 : i32
    return %arg0, %c0_i32 : i32, i32
  }
}

module attributes {stable_mosaic.version = 11 : i64} {
  func.func @_pool_stats_kernel(%arg0: i32, %arg1: memref<1x16x2x8x128xbf16, #tpu.memory_space<vmem>>, %arg2: memref<1x8x8x1xf32, #tpu.memory_space<vmem>>, %arg3: memref<1x8x8x1xf32, #tpu.memory_space<vmem>>) attributes {dimension_semantics = [#tpu.dimension_semantics<parallel>], iteration_bounds = array<i64: 2>, scalar_prefetch = 0 : i64, scratch_operands = 0 : i64, tpu.core_type = #tpu.core_type<tc>, window_params = [{transform_indices = @transform_0, window_bounds = array<i64: 1, 16, 2, 8, 128>}, {transform_indices = @transform_1, window_bounds = array<i64: 1, 8, 8, 1>}, {transform_indices = @transform_2, window_bounds = array<i64: 1, 8, 8, 1>}]} {
    %c0 = arith.constant 0 : index
    %c0_0 = arith.constant 0 : index
    %c0_1 = arith.constant 0 : index
    %c0_2 = arith.constant 0 : index
    %c0_3 = arith.constant 0 : index
    %0 = vector.load %arg1[%c0, %c0_0, %c0_1, %c0_2, %c0_3] : memref<1x16x2x8x128xbf16, #tpu.memory_space<vmem>>, vector<1x16x2x8x128xbf16>
    %1 = vector.shape_cast %0 : vector<1x16x2x8x128xbf16> to vector<16x2x8x128xbf16>
    %2 = vector.extract_strided_slice %1 {offsets = [0, 0, 0, 0], sizes = [16, 1, 8, 128], strides = [1, 1, 1, 1]} : vector<16x2x8x128xbf16> to vector<16x1x8x128xbf16>
    %3 = vector.shape_cast %2 : vector<16x1x8x128xbf16> to vector<16x8x128xbf16>
    %4 = arith.extf %3 : vector<16x8x128xbf16> to vector<16x8x128xf32>
    %5 = vector.extract_strided_slice %1 {offsets = [0, 1, 0, 0], sizes = [16, 1, 8, 128], strides = [1, 1, 1, 1]} : vector<16x2x8x128xbf16> to vector<16x1x8x128xbf16>
    %6 = vector.shape_cast %5 : vector<16x1x8x128xbf16> to vector<16x8x128xbf16>
    %7 = arith.extf %6 : vector<16x8x128xbf16> to vector<16x8x128xf32>
    %c1_i32 = arith.constant 1 : i32
    %8 = tpu.dynamic_rotate %7 by %c1_i32 dim 1 : vector<16x8x128xf32>, i32 -> vector<16x8x128xf32>
    %9 = tpu.iota {dimensions = array<i32: 1>} : vector<16x8x128xi32>
    %c0_i32 = arith.constant 0 : i32
    %10 = vector.broadcast %c0_i32 : i32 to vector<16x8x128xi32>
    %11 = arith.cmpi eq, %9, %10 : vector<16x8x128xi32>
    %cst = arith.constant 0.000000e+00 : f32
    %12 = vector.broadcast %cst : f32 to vector<16x8x128xf32>
    %13 = arith.select %11, %12, %8 : vector<16x8x128xi1>, vector<16x8x128xf32>
    %14 = arith.maximumf %13, %4 : vector<16x8x128xf32>
    %15 = arith.maximumf %14, %7 : vector<16x8x128xf32>
    %16 = vector.shape_cast %15 : vector<16x8x128xf32> to vector<8x2x8x128xf32>
    %17 = vector.extract_strided_slice %16 {offsets = [0, 0, 0, 0], sizes = [8, 1, 8, 128], strides = [1, 1, 1, 1]} : vector<8x2x8x128xf32> to vector<8x1x8x128xf32>
    %18 = vector.shape_cast %17 : vector<8x1x8x128xf32> to vector<8x8x128xf32>
    %19 = vector.extract_strided_slice %16 {offsets = [0, 1, 0, 0], sizes = [8, 1, 8, 128], strides = [1, 1, 1, 1]} : vector<8x2x8x128xf32> to vector<8x1x8x128xf32>
    %20 = vector.shape_cast %19 : vector<8x1x8x128xf32> to vector<8x8x128xf32>
    %cst_4 = arith.constant 0.000000e+00 : f32
    %21 = vector.broadcast %cst_4 : f32 to vector<1x8x128xf32>
    %22 = vector.extract_strided_slice %20 {offsets = [0, 0, 0], sizes = [7, 8, 128], strides = [1, 1, 1]} : vector<8x8x128xf32> to vector<7x8x128xf32>
    %23 = tpu.concatenate %21, %22 in 0 : vector<1x8x128xf32>, vector<7x8x128xf32> -> vector<8x8x128xf32>
    %24 = arith.maximumf %23, %18 : vector<8x8x128xf32>
    %25 = arith.maximumf %24, %20 : vector<8x8x128xf32>
    %26 = tpu.iota {dimensions = array<i32: 2>} : vector<8x8x128xi32>
    %c8_i32 = arith.constant 8 : i32
    %27 = vector.broadcast %c8_i32 : i32 to vector<8x8x128xi32>
    %28 = arith.cmpi slt, %26, %27 : vector<8x8x128xi32>
    %cst_5 = arith.constant 0.000000e+00 : f32
    %29 = vector.broadcast %cst_5 : f32 to vector<8x8x128xf32>
    %30 = arith.select %28, %25, %29 : vector<8x8x128xi1>, vector<8x8x128xf32>
    %cst_6 = arith.constant dense<0.000000e+00> : vector<8x8xf32>
    %31 = vector.multi_reduction <add>, %30, %cst_6 [2] : vector<8x8x128xf32> to vector<8x8xf32>
    %32 = vector.shape_cast %31 : vector<8x8xf32> to vector<8x8x1xf32>
    %cst_7 = arith.constant 1.250000e-01 : f32
    %33 = vector.broadcast %cst_7 : f32 to vector<8x8x1xf32>
    %34 = arith.mulf %32, %33 : vector<8x8x1xf32>
    %35 = vector.broadcast %34 : vector<8x8x1xf32> to vector<8x8x128xf32>
    %36 = arith.subf %25, %35 : vector<8x8x128xf32>
    %cst_8 = arith.constant 0.000000e+00 : f32
    %37 = vector.broadcast %cst_8 : f32 to vector<8x8x128xf32>
    %38 = arith.select %28, %36, %37 : vector<8x8x128xi1>, vector<8x8x128xf32>
    %39 = arith.mulf %38, %38 : vector<8x8x128xf32>
    %cst_9 = arith.constant dense<0.000000e+00> : vector<8x8xf32>
    %40 = vector.multi_reduction <add>, %39, %cst_9 [2] : vector<8x8x128xf32> to vector<8x8xf32>
    %41 = vector.shape_cast %40 : vector<8x8xf32> to vector<8x8x1xf32>
    %cst_10 = arith.constant 0.142857149 : f32
    %42 = vector.broadcast %cst_10 : f32 to vector<8x8x1xf32>
    %43 = arith.mulf %41, %42 : vector<8x8x1xf32>
    %44 = math.sqrt %43 : vector<8x8x1xf32>
    %c0_11 = arith.constant 0 : index
    %c0_12 = arith.constant 0 : index
    %c0_13 = arith.constant 0 : index
    %c0_14 = arith.constant 0 : index
    %45 = vector.load %arg2[%c0_11, %c0_12, %c0_13, %c0_14] : memref<1x8x8x1xf32, #tpu.memory_space<vmem>>, vector<1x8x8x1xf32>
    %46 = vector.shape_cast %45 : vector<1x8x8x1xf32> to vector<8x8x1xf32>
    %47 = vector.shape_cast %44 : vector<8x8x1xf32> to vector<1x8x8x1xf32>
    tpu.vector_store %arg2[%c0_11, %c0_12, %c0_13, %c0_14], %47 {strides = array<i32>} : memref<1x8x8x1xf32, #tpu.memory_space<vmem>>, vector<1x8x8x1xf32>,
    %c0_15 = arith.constant 0 : index
    %c0_16 = arith.constant 0 : index
    %c0_17 = arith.constant 0 : index
    %c0_18 = arith.constant 0 : index
    %48 = vector.load %arg3[%c0_15, %c0_16, %c0_17, %c0_18] : memref<1x8x8x1xf32, #tpu.memory_space<vmem>>, vector<1x8x8x1xf32>
    %49 = vector.shape_cast %48 : vector<1x8x8x1xf32> to vector<8x8x1xf32>
    %50 = vector.shape_cast %34 : vector<8x8x1xf32> to vector<1x8x8x1xf32>
    tpu.vector_store %arg3[%c0_15, %c0_16, %c0_17, %c0_18], %50 {strides = array<i32>} : memref<1x8x8x1xf32, #tpu.memory_space<vmem>>, vector<1x8x8x1xf32>,
    return
  }
  func.func @transform_0(%arg0: i32) -> (i32, i32, i32, i32, i32) {
    %c0_i32 = arith.constant 0 : i32
    %c0_i32_0 = arith.constant 0 : i32
    %c0_i32_1 = arith.constant 0 : i32
    %c0_i32_2 = arith.constant 0 : i32
    %c0_i32_3 = arith.constant 0 : i32
    return %arg0, %c0_i32, %c0_i32_0, %c0_i32_1, %c0_i32_2 : i32, i32, i32, i32, i32
  }
  func.func @transform_1(%arg0: i32) -> (i32, i32, i32, i32) {
    %c0_i32 = arith.constant 0 : i32
    %c0_i32_0 = arith.constant 0 : i32
    %c0_i32_1 = arith.constant 0 : i32
    %c0_i32_2 = arith.constant 0 : i32
    return %arg0, %c0_i32, %c0_i32_0, %c0_i32_1 : i32, i32, i32, i32
  }
  func.func @transform_2(%arg0: i32) -> (i32, i32, i32, i32) {
    %c0_i32 = arith.constant 0 : i32
    %c0_i32_0 = arith.constant 0 : i32
    %c0_i32_1 = arith.constant 0 : i32
    %c0_i32_2 = arith.constant 0 : i32
    return %arg0, %c0_i32, %c0_i32_0, %c0_i32_1 : i32, i32, i32, i32
  }
}

module attributes {stable_mosaic.version = 11 : i64} {
  func.func @_head_kernel(%arg0: i32, %arg1: memref<2x64xf32, #tpu.memory_space<vmem>>, %arg2: memref<2x64xf32, #tpu.memory_space<vmem>>, %arg3: memref<64x128xbf16, #tpu.memory_space<vmem>>, %arg4: memref<64x128xbf16, #tpu.memory_space<vmem>>, %arg5: memref<1x128xf32, #tpu.memory_space<vmem>>, %arg6: memref<128x128xbf16, #tpu.memory_space<vmem>>, %arg7: memref<1x128xf32, #tpu.memory_space<vmem>>, %arg8: memref<2x128xf32, #tpu.memory_space<vmem>>) attributes {dimension_semantics = [#tpu.dimension_semantics<arbitrary>], iteration_bounds = array<i64: 1>, scalar_prefetch = 0 : i64, scratch_operands = 0 : i64, tpu.core_type = #tpu.core_type<tc>, window_params = [{pipeline_mode = #tpu.pipeline_mode<synchronous>, transform_indices = @transform_0, window_bounds = array<i64: 2, 64>}, {pipeline_mode = #tpu.pipeline_mode<synchronous>, transform_indices = @transform_1, window_bounds = array<i64: 2, 64>}, {pipeline_mode = #tpu.pipeline_mode<synchronous>, transform_indices = @transform_2, window_bounds = array<i64: 64, 128>}, {pipeline_mode = #tpu.pipeline_mode<synchronous>, transform_indices = @transform_3, window_bounds = array<i64: 64, 128>}, {pipeline_mode = #tpu.pipeline_mode<synchronous>, transform_indices = @transform_4, window_bounds = array<i64: 1, 128>}, {pipeline_mode = #tpu.pipeline_mode<synchronous>, transform_indices = @transform_5, window_bounds = array<i64: 128, 128>}, {pipeline_mode = #tpu.pipeline_mode<synchronous>, transform_indices = @transform_6, window_bounds = array<i64: 1, 128>}, {pipeline_mode = #tpu.pipeline_mode<synchronous>, transform_indices = @transform_7, window_bounds = array<i64: 2, 128>}]} {
    %c0 = arith.constant 0 : index
    %c0_0 = arith.constant 0 : index
    %0 = vector.load %arg1[%c0, %c0_0] : memref<2x64xf32, #tpu.memory_space<vmem>>, vector<2x64xf32>
    %1 = arith.truncf %0 : vector<2x64xf32> to vector<2x64xbf16>
    %c0_1 = arith.constant 0 : index
    %c0_2 = arith.constant 0 : index
    %2 = vector.load %arg2[%c0_1, %c0_2] : memref<2x64xf32, #tpu.memory_space<vmem>>, vector<2x64xf32>
    %3 = arith.truncf %2 : vector<2x64xf32> to vector<2x64xbf16>
    %c0_3 = arith.constant 0 : index
    %c0_4 = arith.constant 0 : index
    %4 = vector.load %arg3[%c0_3, %c0_4] : memref<64x128xbf16, #tpu.memory_space<vmem>>, vector<64x128xbf16>
    %cst = arith.constant dense<0.000000e+00> : vector<2x128xf32>
    %5 = tpu.matmul %1, %4, %cst {dimension_numbers = #tpu.dot_dimension_numbers<[1], [0], [0], [1], [0, 0, 1, 1], [], []>} : vector<2x64xbf16>, vector<64x128xbf16>, vector<2x128xf32> -> vector<2x128xf32>
    %c0_5 = arith.constant 0 : index
    %c0_6 = arith.constant 0 : index
    %6 = vector.load %arg4[%c0_5, %c0_6] : memref<64x128xbf16, #tpu.memory_space<vmem>>, vector<64x128xbf16>
    %cst_7 = arith.constant dense<0.000000e+00> : vector<2x128xf32>
    %7 = tpu.matmul %3, %6, %cst_7 {dimension_numbers = #tpu.dot_dimension_numbers<[1], [0], [0], [1], [0, 0, 1, 1], [], []>} : vector<2x64xbf16>, vector<64x128xbf16>, vector<2x128xf32> -> vector<2x128xf32>
    %8 = arith.addf %5, %7 : vector<2x128xf32>
    %c0_8 = arith.constant 0 : index
    %c0_9 = arith.constant 0 : index
    %9 = vector.load %arg5[%c0_8, %c0_9] : memref<1x128xf32, #tpu.memory_space<vmem>>, vector<1x128xf32>
    %10 = vector.broadcast %9 : vector<1x128xf32> to vector<2x128xf32>
    %11 = arith.addf %8, %10 : vector<2x128xf32>
    %cst_10 = arith.constant 0.000000e+00 : f32
    %12 = vector.broadcast %cst_10 : f32 to vector<2x128xf32>
    %13 = arith.maximumf %11, %12 : vector<2x128xf32>
    %14 = arith.truncf %13 : vector<2x128xf32> to vector<2x128xbf16>
    %c0_11 = arith.constant 0 : index
    %c0_12 = arith.constant 0 : index
    %15 = vector.load %arg6[%c0_11, %c0_12] : memref<128x128xbf16, #tpu.memory_space<vmem>>, vector<128x128xbf16>
    %cst_13 = arith.constant dense<0.000000e+00> : vector<2x128xf32>
    %16 = tpu.matmul %14, %15, %cst_13 {dimension_numbers = #tpu.dot_dimension_numbers<[1], [0], [0], [1], [0, 0, 1, 1], [], []>} : vector<2x128xbf16>, vector<128x128xbf16>, vector<2x128xf32> -> vector<2x128xf32>
    %c0_14 = arith.constant 0 : index
    %c0_15 = arith.constant 0 : index
    %17 = vector.load %arg7[%c0_14, %c0_15] : memref<1x128xf32, #tpu.memory_space<vmem>>, vector<1x128xf32>
    %18 = vector.broadcast %17 : vector<1x128xf32> to vector<2x128xf32>
    %19 = arith.addf %16, %18 : vector<2x128xf32>
    %c0_16 = arith.constant 0 : index
    %c0_17 = arith.constant 0 : index
    %20 = vector.load %arg8[%c0_16, %c0_17] : memref<2x128xf32, #tpu.memory_space<vmem>>, vector<2x128xf32>
    tpu.vector_store %arg8[%c0_16, %c0_17], %19 {strides = array<i32>} : memref<2x128xf32, #tpu.memory_space<vmem>>, vector<2x128xf32>,
    return
  }
  func.func @transform_0(%arg0: i32) -> (i32, i32) {
    %c0_i32 = arith.constant 0 : i32
    %c0_i32_0 = arith.constant 0 : i32
    %c0_i32_1 = arith.constant 0 : i32
    return %c0_i32, %c0_i32_0 : i32, i32
  }
  func.func @transform_1(%arg0: i32) -> (i32, i32) {
    %c0_i32 = arith.constant 0 : i32
    %c0_i32_0 = arith.constant 0 : i32
    %c0_i32_1 = arith.constant 0 : i32
    return %c0_i32, %c0_i32_0 : i32, i32
  }
  func.func @transform_2(%arg0: i32) -> (i32, i32) {
    %c0_i32 = arith.constant 0 : i32
    %c0_i32_0 = arith.constant 0 : i32
    %c0_i32_1 = arith.constant 0 : i32
    return %c0_i32, %c0_i32_0 : i32, i32
  }
  func.func @transform_3(%arg0: i32) -> (i32, i32) {
    %c0_i32 = arith.constant 0 : i32
    %c0_i32_0 = arith.constant 0 : i32
    %c0_i32_1 = arith.constant 0 : i32
    return %c0_i32, %c0_i32_0 : i32, i32
  }
  func.func @transform_4(%arg0: i32) -> (i32, i32) {
    %c0_i32 = arith.constant 0 : i32
    %c0_i32_0 = arith.constant 0 : i32
    %c0_i32_1 = arith.constant 0 : i32
    return %c0_i32, %c0_i32_0 : i32, i32
  }
  func.func @transform_5(%arg0: i32) -> (i32, i32) {
    %c0_i32 = arith.constant 0 : i32
    %c0_i32_0 = arith.constant 0 : i32
    %c0_i32_1 = arith.constant 0 : i32
    return %c0_i32, %c0_i32_0 : i32, i32
  }
  func.func @transform_6(%arg0: i32) -> (i32, i32) {
    %c0_i32 = arith.constant 0 : i32
    %c0_i32_0 = arith.constant 0 : i32
    %c0_i32_1 = arith.constant 0 : i32
    return %c0_i32, %c0_i32_0 : i32, i32
  }
  func.func @transform_7(%arg0: i32) -> (i32, i32) {
    %c0_i32 = arith.constant 0 : i32
    %c0_i32_0 = arith.constant 0 : i32
    %c0_i32_1 = arith.constant 0 : i32
    return %c0_i32, %c0_i32_0 : i32, i32
  }
}

</mosaic_0001>

<llo_original>
// kernel: static_heatmap_classifier_forward.4
$region0: #{static_heatmap_classifier_forward.4}
  #allocation0 [shape = 'u32[]', space=smem, size = 0x4, offset = 0x4, fixed_abs, tag = 'smem constant byte address 0x4 - core index']
  #allocation1 [shape = 'u32[144,128]{1,0:T(1,128)}', space=vmem, size = 0x12000, scoped, tag = 'internal scratch']
  %s0 = inlined_call_operand.vmem [shape: bf16[2,16,2,8,128], index: 0, kind: input, shape index: {}]
  %s1 = inlined_call_operand.vmem [shape: f32[2,8,8,1], index: 1, kind: output, shape index: {0}]
  %s2 = inlined_call_operand.vmem [shape: f32[2,8,8,1], index: 2, kind: output, shape index: {1}]
  %3 = xla_tuple %s1, %s2
  %s4 = sld [smem:[#allocation0]]
  $region45: #{static_heatmap_classifier_forward.4} parent=0
    _
  %s6 = ssub.s32 1, %s4
  %s7 = scalar_select 0, %s6, %s4
  loop: start=0, step=1, limit=4
  $region2: #{static_heatmap_classifier_forward.4} parent=0 // loop_pre_header
    _
  $region3: #{static_heatmap_classifier_forward.4} parent=0 // loop_header
    %s9 = sphi 0, %s13
    %p10 = scmp.ge.s32.totalorder %s9, 4
    %s19 = sphi 0, %s21
    %s22 = sphi 0, %s19
    %s23 = sphi 0, %s22
    %s39 = sphi 0, %s23
    %s45 = sphi 0, %s47
    %s48 = sphi 0, %s45
    %s49 = sphi 0, %s48
    %s65 = sphi 0, %s49
    %s71 = sphi 0, %s73
    %s74 = sphi 0, %s71
    %s75 = sphi 0, %s74
    %s91 = sphi 0, %s75
  $region4: #{static_heatmap_classifier_forward.4} parent=0 // loop_header_branch
    %12 = sbr.rel (%p10) target = $region8
  $region5: #{static_heatmap_classifier_forward.4} parent=0 // loop_body
    %s14 = ssub.s32 %s9, 1
    %s15 = ssub.s32 %s9, 2
    %s16 = sadd.s32 %s9, 1
    %s17 = ssub.s32 %s9, %s16
    %p18 = scmp.eq.s32.totalorder %s17, 0
    %s20 = sadd.s32 %s19, 1
    %s21 = scalar_select %p18, %s19, %s20
    %p24 = pneg %p18
    %p25 = scmp.eq.s32.totalorder %s9, 1
    %p26 = por %p24, %p25
    %p27 = scmp.ne.s32.totalorder %s19, %s22
    %p28 = scmp.eq.s32.totalorder %s9, 0
    %p29 = por %p27, %p28
    %p30 = scmp.ne.s32.totalorder %s19, %s22
    %p31 = scmp.eq.s32.totalorder %s14, 1
    %p32 = por %p30, %p31
    %p33 = scmp.ne.s32.totalorder %s22, %s23
    %p34 = scmp.eq.s32.totalorder %s14, 0
    %p35 = por %p33, %p34
    %p36 = scmp.ne.s32.totalorder %s22, %s23
    %p37 = scmp.eq.s32.totalorder %s15, 1
    %p38 = por %p36, %p37
    %p40 = scmp.ne.s32.totalorder %s23, %s39
    %p41 = scmp.eq.s32.totalorder %s15, 0
    %p42 = por %p40, %p41
    %s43 = ssub.s32 %s9, %s16
    %p44 = scmp.eq.s32.totalorder %s43, 0
    %s46 = sadd.s32 %s45, 1
    %s47 = scalar_select %p44, %s45, %s46
    %p50 = pneg %p44
    %p51 = scmp.eq.s32.totalorder %s9, 1
    %p52 = por %p50, %p51
    %p53 = scmp.ne.s32.totalorder %s45, %s48
    %p54 = scmp.eq.s32.totalorder %s9, 0
    %p55 = por %p53, %p54
    %p56 = scmp.ne.s32.totalorder %s45, %s48
    %p57 = scmp.eq.s32.totalorder %s14, 1
    %p58 = por %p56, %p57
    %p59 = scmp.ne.s32.totalorder %s48, %s49
    %p60 = scmp.eq.s32.totalorder %s14, 0
    %p61 = por %p59, %p60
    %p62 = scmp.ne.s32.totalorder %s48, %s49
    %p63 = scmp.eq.s32.totalorder %s15, 1
    %p64 = por %p62, %p63
    %p66 = scmp.ne.s32.totalorder %s49, %s65
    %p67 = scmp.eq.s32.totalorder %s15, 0
    %p68 = por %p66, %p67
    %s69 = ssub.s32 %s9, %s16
    %p70 = scmp.eq.s32.totalorder %s69, 0
    %s72 = sadd.s32 %s71, 1
    %s73 = scalar_select %p70, %s71, %s72
    %p76 = pneg %p70
    %p77 = scmp.eq.s32.totalorder %s9, 1
    %p78 = por %p76, %p77
    %p79 = scmp.ne.s32.totalorder %s71, %s74
    %p80 = scmp.eq.s32.totalorder %s9, 0
    %p81 = por %p79, %p80
    %p82 = scmp.ne.s32.totalorder %s71, %s74
    %p83 = scmp.eq.s32.totalorder %s14, 1
    %p84 = por %p82, %p83
    %p85 = scmp.ne.s32.totalorder %s74, %s75
    %p86 = scmp.eq.s32.totalorder %s14, 0
    %p87 = por %p85, %p86
    %p88 = scmp.ne.s32.totalorder %s74, %s75
    %p89 = scmp.eq.s32.totalorder %s15, 1
    %p90 = por %p88, %p89
    %p92 = scmp.ne.s32.totalorder %s75, %s91
    %p93 = scmp.eq.s32.totalorder %s15, 0
    %p94 = por %p92, %p93
    %p95 = scmp.le.s32.totalorder 1, %s9
    %p96 = scmp.lt.s32.totalorder %s9, 3
    %p97 = pnand %p95, %p96
    %p98 = pneg %p97
    // Predicated region
    $region9: #{static_heatmap_classifier_forward.4} parent=5 // pred_check
      _
    $region10: #{static_heatmap_classifier_forward.4} parent=5 // pred_check_branch
      %100 = sbr.rel (%p97) target = $region12
    $region11: #{static_heatmap_classifier_forward.4} parent=5 // pred_region
      %s101 = ssub.s32 %s9, 1
    $region12: #{static_heatmap_classifier_forward.4} parent=5 // pred_fallthru
      _
    %p102 = scmp.lt.s32.totalorder %s9, 2
    // Predicated region
    $region13: #{static_heatmap_classifier_forward.4} parent=5 // pred_check
      %p103 = pneg %p102
    $region14: #{static_heatmap_classifier_forward.4} parent=5 // pred_check_branch
      %105 = sbr.rel (%p103) target = $region16
    $region15: #{static_heatmap_classifier_forward.4} parent=5 // pred_region
      // Predicated region
      $region17: #{static_heatmap_classifier_forward.4} parent=15 // pred_check
        %p106 = pneg %p29
      $region18: #{static_heatmap_classifier_forward.4} parent=15 // pred_check_branch
        %108 = sbr.rel (%p106) target = $region20
      $region19: #{static_heatmap_classifier_forward.4} parent=15 // pred_region
        %p109 = scmp.lt.s32.totalorder %s9, 1
        %s110 = scalar_select %p109, %s9, 1
        %s111 = smul.addr %s110, 32
        %s112 = smul.addr %s111, 4
        %s113 = scalar_lea.vmem %s0, %s112
      $region20: #{static_heatmap_classifier_forward.4} parent=15 // pred_fallthru
        _
    $region16: #{static_heatmap_classifier_forward.4} parent=5 // pred_fallthru
      _
    %p114 = scmp.le.s32.totalorder 1, %s9
    %p115 = scmp.lt.s32.totalorder %s9, 3
    %p116 = pnand %p114, %p115
    %p117 = pneg %p116
    // Predicated region
    $region21: #{static_heatmap_classifier_forward.4} parent=5 // pred_check
      _
    $region22: #{static_heatmap_classifier_forward.4} parent=5 // pred_check_branch
      %119 = sbr.rel (%p116) target = $region24
    $region23: #{static_heatmap_classifier_forward.4} parent=5 // pred_region
      %s120 = ssub.s32 %s9, 1
      %p121 = scmp.lt.s32.totalorder %s14, 1
      %s122 = scalar_select %p121, %s14, 1
      %s123 = smul.addr %s122, 32
      %s124 = smul.addr %s123, 4
      %s125 = scalar_lea.vmem %s0, %s124
      %p126 = pneg %p35
      %p127 = pneg %p32
      %p128 = pneg %p61
      %p129 = pneg %p58
      %p130 = scmp.lt.s32.totalorder %s14, 1
      %s131 = scalar_select %p130, %s14, 1
      %s132 = smul.addr %s131, 8
      %s133 = smul.addr %s132, 8
      %s134 = scalar_lea.vmem %s1, %s133
      %p135 = pneg %p87
      %p136 = pneg %p84
      %p137 = scmp.lt.s32.totalorder %s14, 1
      %s138 = scalar_select %p137, %s14, 1
      %s139 = smul.addr %s138, 8
      %s140 = smul.addr %s139, 8
      %s141 = scalar_lea.vmem %s2, %s140
      %p142 = scmp.lt.s32.totalorder %s14, 1
      %s143 = scalar_select %p142, %s14, 1
      %s144 = smul.addr %s143, 32
      %s145 = smul.addr %s144, 4
      %s146 = scalar_lea.vmem %s0, %s145
      %p147 = scmp.lt.s32.totalorder %s14, 1
      %s148 = scalar_select %p147, %s14, 1
      %s149 = smul.addr %s148, 8
      %s150 = smul.addr %s149, 8
      %s151 = scalar_lea.vmem %s1, %s150
      %p152 = scmp.lt.s32.totalorder %s14, 1
      %s153 = scalar_select %p152, %s14, 1
      %s154 = smul.addr %s153, 8
      %s155 = smul.addr %s154, 8
      %s156 = scalar_lea.vmem %s2, %s155
      %v157 = vld [vmem:[%s146] sm:$0xf]
      %v158 = vld [vmem:[%s146 + $0x4] sm:$0xf]
      %v159 = vld [vmem:[%s146 + $0x8] sm:$0xf]
      %v160 = vld [vmem:[%s146 + $0xc] sm:$0xf]
      %v161 = vld [vmem:[%s146 + $0x10] sm:$0xf]
      %v162 = vld [vmem:[%s146 + $0x14] sm:$0xf]
      %v163 = vld [vmem:[%s146 + $0x18] sm:$0xf]
      %v164 = vld [vmem:[%s146 + $0x1c] sm:$0xf]
      %v165 = vld [vmem:[%s146 + $0x20] sm:$0xf]
      %v166 = vld [vmem:[%s146 + $0x24] sm:$0xf]
      %v167 = vld [vmem:[%s146 + $0x28] sm:$0xf]
      %v168 = vld [vmem:[%s146 + $0x2c] sm:$0xf]
      %v169 = vld [vmem:[%s146 + $0x30] sm:$0xf]
      %v170 = vld [vmem:[%s146 + $0x34] sm:$0xf]
      %v171 = vld [vmem:[%s146 + $0x38] sm:$0xf]
      %v172 = vld [vmem:[%s146 + $0x3c] sm:$0xf]
      %v173 = vld [vmem:[%s146 + $0x40] sm:$0xf]
      %v174 = vld [vmem:[%s146 + $0x44] sm:$0xf]
      %v175 = vld [vmem:[%s146 + $0x48] sm:$0xf]
      %v176 = vld [vmem:[%s146 + $0x4c] sm:$0xf]
      %v177 = vld [vmem:[%s146 + $0x50] sm:$0xf]
      %v178 = vld [vmem:[%s146 + $0x54] sm:$0xf]
      %v179 = vld [vmem:[%s146 + $0x58] sm:$0xf]
      %v180 = vld [vmem:[%s146 + $0x5c] sm:$0xf]
      %v181 = vld [vmem:[%s146 + $0x60] sm:$0xf]
      %v182 = vld [vmem:[%s146 + $0x64] sm:$0xf]
      %v183 = vld [vmem:[%s146 + $0x68] sm:$0xf]
      %v184 = vld [vmem:[%s146 + $0x6c] sm:$0xf]
      %v185 = vld [vmem:[%s146 + $0x70] sm:$0xf]
      %v186 = vld [vmem:[%s146 + $0x74] sm:$0xf]
      %v187 = vld [vmem:[%s146 + $0x78] sm:$0xf]
      %v188 = vld [vmem:[%s146 + $0x7c] sm:$0xf]
      %v189 = vunpack.c.l.bf16 %v157
      %v190 = vunpack.c.l.bf16 %v159
      %v191 = vunpack.c.l.bf16 %v161
      %v192 = vunpack.c.l.bf16 %v163
      %v193 = vunpack.c.l.bf16 %v165
      %v194 = vunpack.c.l.bf16 %v167
      %v195 = vunpack.c.l.bf16 %v169
      %v196 = vunpack.c.l.bf16 %v171
      %v197 = vunpack.c.l.bf16 %v173
      %v198 = vunpack.c.l.bf16 %v175
      %v199 = vunpack.c.l.bf16 %v177
      %v200 = vunpack.c.l.bf16 %v179
      %v201 = vunpack.c.l.bf16 %v181
      %v202 = vunpack.c.l.bf16 %v183
      %v203 = vunpack.c.l.bf16 %v185
      %v204 = vunpack.c.l.bf16 %v187
      %v205 = vunpack.c.l.bf16 %v158
      %v206 = vunpack.c.l.bf16 %v160
      %v207 = vunpack.c.l.bf16 %v162
      %v208 = vunpack.c.l.bf16 %v164
      %v209 = vunpack.c.l.bf16 %v166
      %v210 = vunpack.c.l.bf16 %v168
      %v211 = vunpack.c.l.bf16 %v170
      %v212 = vunpack.c.l.bf16 %v172
      %v213 = vunpack.c.l.bf16 %v174
      %v214 = vunpack.c.l.bf16 %v176
      %v215 = vunpack.c.l.bf16 %v178
      %v216 = vunpack.c.l.bf16 %v180
      %v217 = vunpack.c.l.bf16 %v182
      %v218 = vunpack.c.l.bf16 %v184
      %v219 = vunpack.c.l.bf16 %v186
      %v220 = vunpack.c.l.bf16 %v188
      %v221 = vrot.slane %v205, 7
      %v222 = vrot.slane %v206, 7
      %v223 = vrot.slane %v207, 7
      %v224 = vrot.slane %v208, 7
      %v225 = vrot.slane %v209, 7
      %v226 = vrot.slane %v210, 7
      %v227 = vrot.slane %v211, 7
      %v228 = vrot.slane %v212, 7
      %v229 = vrot.slane %v213, 7
      %v230 = vrot.slane %v214, 7
      %v231 = vrot.slane %v215, 7
      %v232 = vrot.slane %v216, 7
      %v233 = vrot.slane %v217, 7
      %v234 = vrot.slane %v218, 7
      %v235 = vrot.slane %v219, 7
      %v236 = vrot.slane %v220, 7
      %v237 = vlaneseq
      %v238 = vshrl.u32 %v237, 7
      %vm239 = vcmp.eq.s32.totalorder %v238, 0
      %v240 = vsel %vm239, 0.0, %v221
      %v241 = vsel %vm239, 0.0, %v222
      %v242 = vsel %vm239, 0.0, %v223
      %v243 = vsel %vm239, 0.0, %v224
      %v244 = vsel %vm239, 0.0, %v225
      %v245 = vsel %vm239, 0.0, %v226
      %v246 = vsel %vm239, 0.0, %v227
      %v247 = vsel %vm239, 0.0, %v228
      %v248 = vsel %vm239, 0.0, %v229
      %v249 = vsel %vm239, 0.0, %v230
      %v250 = vsel %vm239, 0.0, %v231
      %v251 = vsel %vm239, 0.0, %v232
      %v252 = vsel %vm239, 0.0, %v233
      %v253 = vsel %vm239, 0.0, %v234
      %v254 = vsel %vm239, 0.0, %v235
      %v255 = vsel %vm239, 0.0, %v236
      %v256 = vmax.f32 %v240, %v189
      %v257 = vmax.f32 %v241, %v190
      %v258 = vmax.f32 %v242, %v191
      %v259 = vmax.f32 %v243, %v192
      %v260 = vmax.f32 %v244, %v193
      %v261 = vmax.f32 %v245, %v194
      %v262 = vmax.f32 %v246, %v195
      %v263 = vmax.f32 %v247, %v196
      %v264 = vmax.f32 %v248, %v197
      %v265 = vmax.f32 %v249, %v198
      %v266 = vmax.f32 %v250, %v199
      %v267 = vmax.f32 %v251, %v200
      %v268 = vmax.f32 %v252, %v201
      %v269 = vmax.f32 %v253, %v202
      %v270 = vmax.f32 %v254, %v203
      %v271 = vmax.f32 %v255, %v204
      %v272 = vmax.f32 %v256, %v205
      %v273 = vmax.f32 %v257, %v206
      %v274 = vmax.f32 %v258, %v207
      %v275 = vmax.f32 %v259, %v208
      %v276 = vmax.f32 %v260, %v209
      %v277 = vmax.f32 %v261, %v210
      %v278 = vmax.f32 %v262, %v211
      %v279 = vmax.f32 %v263, %v212
      %v280 = vmax.f32 %v264, %v213
      %v281 = vmax.f32 %v265, %v214
      %v282 = vmax.f32 %v266, %v215
      %v283 = vmax.f32 %v267, %v216
      %v284 = vmax.f32 %v268, %v217
      %v285 = vmax.f32 %v269, %v218
      %v286 = vmax.f32 %v270, %v219
      %v287 = vmax.f32 %v271, %v220
      %v288 = vmax.f32 %v272, 0.0
      %v289 = vmax.f32 %v273, %v274
      %v290 = vmax.f32 %v275, %v276
      %v291 = vmax.f32 %v277, %v278
      %v292 = vmax.f32 %v279, %v280
      %v293 = vmax.f32 %v281, %v282
      %v294 = vmax.f32 %v283, %v284
      %v295 = vmax.f32 %v285, %v286
      %v296 = vmax.f32 %v288, %v273
      %v297 = vmax.f32 %v289, %v275
      %v298 = vmax.f32 %v290, %v277
      %v299 = vmax.f32 %v291, %v279
      %v300 = vmax.f32 %v292, %v281
      %v301 = vmax.f32 %v293, %v283
      %v302 = vmax.f32 %v294, %v285
      %v303 = vmax.f32 %v295, %v287
      %v304 = vlaneseq
      %v305 = vand.u32 %v304, 127
      %vm306 = vcmp.lt.s32.totalorder %v305, 8
      %v307 = vsel %vm306, %v296, 0.0
      %v308 = vsel %vm306, %v297, 0.0
      %v309 = vsel %vm306, %v298, 0.0
      %v310 = vsel %vm306, %v299, 0.0
      %v311 = vsel %vm306, %v300, 0.0
      %v312 = vsel %vm306, %v301, 0.0
      %v313 = vsel %vm306, %v302, 0.0
      %v314 = vsel %vm306, %v303, 0.0
      %315 = vadd.xlane.f32.xlu0 %v307
      %v316 = vpop.xlane.xlu0 %315
      %317 = vadd.xlane.f32.xlu0 %v308
      %v318 = vpop.xlane.xlu0 %317
      %319 = vadd.xlane.f32.xlu0 %v309
      %v320 = vpop.xlane.xlu0 %319
      %321 = vadd.xlane.f32.xlu0 %v310
      %v322 = vpop.xlane.xlu0 %321
      %323 = vadd.xlane.f32.xlu0 %v311
      %v324 = vpop.xlane.xlu0 %323
      %325 = vadd.xlane.f32.xlu0 %v312
      %v326 = vpop.xlane.xlu0 %325
      %327 = vadd.xlane.f32.xlu0 %v313
      %v328 = vpop.xlane.xlu0 %327
      %329 = vadd.xlane.f32.xlu0 %v314
      %v330 = vpop.xlane.xlu0 %329
      %v331 = vmul.f32 %v316, 0.125
      %v332 = vmul.f32 %v318, 0.125
      %v333 = vmul.f32 %v320, 0.125
      %v334 = vmul.f32 %v322, 0.125
      %v335 = vmul.f32 %v324, 0.125
      %v336 = vmul.f32 %v326, 0.125
      %v337 = vmul.f32 %v328, 0.125
      %v338 = vmul.f32 %v330, 0.125
      %v339 = vsub.f32 %v296, %v331
      %v340 = vsub.f32 %v297, %v332
      %v341 = vsub.f32 %v298, %v333
      %v342 = vsub.f32 %v299, %v334
      %v343 = vsub.f32 %v300, %v335
      %v344 = vsub.f32 %v301, %v336
      %v345 = vsub.f32 %v302, %v337
      %v346 = vsub.f32 %v303, %v338
      %v347 = vsel %vm306, %v339, 0.0
      %v348 = vsel %vm306, %v340, 0.0
      %v349 = vsel %vm306, %v341, 0.0
      %v350 = vsel %vm306, %v342, 0.0
      %v351 = vsel %vm306, %v343, 0.0
      %v352 = vsel %vm306, %v344, 0.0
      %v353 = vsel %vm306, %v345, 0.0
      %v354 = vsel %vm306, %v346, 0.0
      %v355 = vmul.f32 %v347, %v347
      %v356 = vmul.f32 %v348, %v348
      %v357 = vmul.f32 %v349, %v349
      %v358 = vmul.f32 %v350, %v350
      %v359 = vmul.f32 %v351, %v351
      %v360 = vmul.f32 %v352, %v352
      %v361 = vmul.f32 %v353, %v353
      %v362 = vmul.f32 %v354, %v354
      %363 = vadd.xlane.f32.xlu0 %v355
      %v364 = vpop.xlane.xlu0 %363
      %365 = vadd.xlane.f32.xlu0 %v356
      %v366 = vpop.xlane.xlu0 %365
      %367 = vadd.xlane.f32.xlu0 %v357
      %v368 = vpop.xlane.xlu0 %367
      %369 = vadd.xlane.f32.xlu0 %v358
      %v370 = vpop.xlane.xlu0 %369
      %371 = vadd.xlane.f32.xlu0 %v359
      %v372 = vpop.xlane.xlu0 %371
      %373 = vadd.xlane.f32.xlu0 %v360
      %v374 = vpop.xlane.xlu0 %373
      %375 = vadd.xlane.f32.xlu0 %v361
      %v376 = vpop.xlane.xlu0 %375
      %377 = vadd.xlane.f32.xlu0 %v362
      %v378 = vpop.xlane.xlu0 %377
      %v379 = vmul.f32 %v364, 0.14285715
      %v380 = vmul.f32 %v366, 0.14285715
      %v381 = vmul.f32 %v368, 0.14285715
      %v382 = vmul.f32 %v370, 0.14285715
      %v383 = vmul.f32 %v372, 0.14285715
      %v384 = vmul.f32 %v374, 0.14285715
      %v385 = vmul.f32 %v376, 0.14285715
      %v386 = vmul.f32 %v378, 0.14285715
      %v387 = vrsqrt.pop %v379
      %v388 = vmul.f32 %v379, %v387
      %vm389 = vcmp.eq.f32.partialorder %v379, inf
      %v390 = vsel %vm389, %v379, %v388
      %vm391 = vcmp.eq.f32.partialorder %v379, 0.0
      %v392 = vand.u32 %v379, 2147483648
      %v393 = vsel %vm391, %v392, %v390
      %v394 = vrsqrt.pop %v380
      %v395 = vmul.f32 %v380, %v394
      %vm396 = vcmp.eq.f32.partialorder %v380, inf
      %v397 = vsel %vm396, %v380, %v395
      %vm398 = vcmp.eq.f32.partialorder %v380, 0.0
      %v399 = vand.u32 %v380, 2147483648
      %v400 = vsel %vm398, %v399, %v397
      %v401 = vrsqrt.pop %v381
      %v402 = vmul.f32 %v381, %v401
      %vm403 = vcmp.eq.f32.partialorder %v381, inf
      %v404 = vsel %vm403, %v381, %v402
      %vm405 = vcmp.eq.f32.partialorder %v381, 0.0
      %v406 = vand.u32 %v381, 2147483648
      %v407 = vsel %vm405, %v406, %v404
      %v408 = vrsqrt.pop %v382
      %v409 = vmul.f32 %v382, %v408
      %vm410 = vcmp.eq.f32.partialorder %v382, inf
      %v411 = vsel %vm410, %v382, %v409
      %vm412 = vcmp.eq.f32.partialorder %v382, 0.0
      %v413 = vand.u32 %v382, 2147483648
      %v414 = vsel %vm412, %v413, %v411
      %v415 = vrsqrt.pop %v383
      %v416 = vmul.f32 %v383, %v415
      %vm417 = vcmp.eq.f32.partialorder %v383, inf
      %v418 = vsel %vm417, %v383, %v416
      %vm419 = vcmp.eq.f32.partialorder %v383, 0.0
      %v420 = vand.u32 %v383, 2147483648
      %v421 = vsel %vm419, %v420, %v418
      %v422 = vrsqrt.pop %v384
      %v423 = vmul.f32 %v384, %v422
      %vm424 = vcmp.eq.f32.partialorder %v384, inf
      %v425 = vsel %vm424, %v384, %v423
      %vm426 = vcmp.eq.f32.partialorder %v384, 0.0
      %v427 = vand.u32 %v384, 2147483648
      %v428 = vsel %vm426, %v427, %v425
      %v429 = vrsqrt.pop %v385
      %v430 = vmul.f32 %v385, %v429
      %vm431 = vcmp.eq.f32.partialorder %v385, inf
      %v432 = vsel %vm431, %v385, %v430
      %vm433 = vcmp.eq.f32.partialorder %v385, 0.0
      %v434 = vand.u32 %v385, 2147483648
      %v435 = vsel %vm433, %v434, %v432
      %v436 = vrsqrt.pop %v386
      %v437 = vmul.f32 %v386, %v436
      %vm438 = vcmp.eq.f32.partialorder %v386, inf
      %v439 = vsel %vm438, %v386, %v437
      %vm440 = vcmp.eq.f32.partialorder %v386, 0.0
      %v441 = vand.u32 %v386, 2147483648
      %v442 = vsel %vm440, %v441, %v439
      %vm443 = vcmask 7168
      %444 = vst.msk [vmem:[%s151] sm:$0xff] %vm443, %v393
      %445 = vst.msk [vmem:[%s151 + $0x8] sm:$0xff] %vm443, %v400
      %446 = vst.msk [vmem:[%s151 + $0x10] sm:$0xff] %vm443, %v407
      %447 = vst.msk [vmem:[%s151 + $0x18] sm:$0xff] %vm443, %v414
      %448 = vst.msk [vmem:[%s151 + $0x20] sm:$0xff] %vm443, %v421
      %449 = vst.msk [vmem:[%s151 + $0x28] sm:$0xff] %vm443, %v428
      %450 = vst.msk [vmem:[%s151 + $0x30] sm:$0xff] %vm443, %v435
      %451 = vst.msk [vmem:[%s151 + $0x38] sm:$0xff] %vm443, %v442
      %452 = vst.msk [vmem:[%s156] sm:$0xff] %vm443, %v331
      %453 = vst.msk [vmem:[%s156 + $0x8] sm:$0xff] %vm443, %v332
      %454 = vst.msk [vmem:[%s156 + $0x10] sm:$0xff] %vm443, %v333
      %455 = vst.msk [vmem:[%s156 + $0x18] sm:$0xff] %vm443, %v334
      %456 = vst.msk [vmem:[%s156 + $0x20] sm:$0xff] %vm443, %v335
      %457 = vst.msk [vmem:[%s156 + $0x28] sm:$0xff] %vm443, %v336
      %458 = vst.msk [vmem:[%s156 + $0x30] sm:$0xff] %vm443, %v337
      %459 = vst.msk [vmem:[%s156 + $0x38] sm:$0xff] %vm443, %v338
      %p460 = scmp.lt.s32.totalorder %s14, 1
      %s461 = scalar_select %p460, %s14, 1
      %s462 = smul.addr %s461, 8
      %s463 = smul.addr %s462, 8
      %s464 = scalar_lea.vmem %s1, %s463
      %p465 = scmp.lt.s32.totalorder %s14, 1
      %s466 = scalar_select %p465, %s14, 1
      %s467 = smul.addr %s466, 8
      %s468 = smul.addr %s467, 8
      %s469 = scalar_lea.vmem %s2, %s468
      // Predicated region
      $region25: #{static_heatmap_classifier_forward.4} parent=23 // pred_check
        %p470 = pneg %p58
      $region26: #{static_heatmap_classifier_forward.4} parent=23 // pred_check_branch
        %472 = sbr.rel (%p470) target = $region28
      $region27: #{static_heatmap_classifier_forward.4} parent=23 // pred_region
        _
      $region28: #{static_heatmap_classifier_forward.4} parent=23 // pred_fallthru
        _
      // Predicated region
      $region29: #{static_heatmap_classifier_forward.4} parent=23 // pred_check
        %p473 = pneg %p84
      $region30: #{static_heatmap_classifier_forward.4} parent=23 // pred_check_branch
        %475 = sbr.rel (%p473) target = $region32
      $region31: #{static_heatmap_classifier_forward.4} parent=23 // pred_region
        _
      $region32: #{static_heatmap_classifier_forward.4} parent=23 // pred_fallthru
        _
    $region24: #{static_heatmap_classifier_forward.4} parent=5 // pred_fallthru
      _
    %p476 = scmp.le.s32.totalorder 2, %s9
    // Predicated region
    $region33: #{static_heatmap_classifier_forward.4} parent=5 // pred_check
      %p477 = pneg %p476
    $region34: #{static_heatmap_classifier_forward.4} parent=5 // pred_check_branch
      %479 = sbr.rel (%p477) target = $region36
    $region35: #{static_heatmap_classifier_forward.4} parent=5 // pred_region
      %s480 = ssub.s32 %s9, 2
      // Predicated region
      $region37: #{static_heatmap_classifier_forward.4} parent=35 // pred_check
        %p481 = pneg %p64
      $region38: #{static_heatmap_classifier_forward.4} parent=35 // pred_check_branch
        %483 = sbr.rel (%p481) target = $region40
      $region39: #{static_heatmap_classifier_forward.4} parent=35 // pred_region
        %p484 = scmp.lt.s32.totalorder %s15, 1
        %s485 = scalar_select %p484, %s15, 1
        %s486 = smul.addr %s485, 8
        %s487 = smul.addr %s486, 8
        %s488 = scalar_lea.vmem %s1, %s487
      $region40: #{static_heatmap_classifier_forward.4} parent=35 // pred_fallthru
        _
      // Predicated region
      $region41: #{static_heatmap_classifier_forward.4} parent=35 // pred_check
        %p489 = pneg %p90
      $region42: #{static_heatmap_classifier_forward.4} parent=35 // pred_check_branch
        %491 = sbr.rel (%p489) target = $region44
      $region43: #{static_heatmap_classifier_forward.4} parent=35 // pred_region
        %p492 = scmp.lt.s32.totalorder %s15, 1
        %s493 = scalar_select %p492, %s15, 1
        %s494 = smul.addr %s493, 8
        %s495 = smul.addr %s494, 8
        %s496 = scalar_lea.vmem %s2, %s495
      $region44: #{static_heatmap_classifier_forward.4} parent=35 // pred_fallthru
        _
    $region36: #{static_heatmap_classifier_forward.4} parent=5 // pred_fallthru
      _
  $region6: #{static_heatmap_classifier_forward.4} parent=0 // loop_footer
    %s13 = sadd.s32 1, %s9
  $region7: #{static_heatmap_classifier_forward.4} parent=0 // loop_footer_branch
    %8 = sbr.rel target = $region3
  $region8: #{static_heatmap_classifier_forward.4} parent=0 // loop_exit
    _

// kernel: static_heatmap_classifier_forward.3
$region0: #{static_heatmap_classifier_forward.3}
  #allocation0 [shape = 'u32[]', space=smem, size = 0x4, offset = 0x4, fixed_abs, tag = 'smem constant byte address 0x4 - core index']
  #allocation1 [shape = 'u32[144,128]{1,0:T(1,128)}', space=vmem, size = 0x12000, scoped, tag = 'internal scratch']
  %s0 = inlined_call_operand.vmem [shape: bf16[512,147], index: 0, kind: input, shape index: {}]
  %s1 = inlined_call_operand.vmem [shape: bf16[147,128], index: 1, kind: input, shape index: {}]
  %s2 = inlined_call_operand.vmem [shape: f32[1,128], index: 2, kind: input, shape index: {}]
  %s3 = inlined_call_operand.vmem [shape: bf16[512,128], index: 3, kind: output, shape index: {}]
  %s4 = sld [smem:[#allocation0]]
  $region22: #{static_heatmap_classifier_forward.3} parent=0
    _
  %s6 = ssub.s32 1, %s4
  %s7 = scalar_select 0, %s6, %s4
  // Predicated region
  $region2: #{static_heatmap_classifier_forward.3} parent=0 // pred_check
    _
  $region3: #{static_heatmap_classifier_forward.3} parent=0 // pred_check_branch
    %9 = sbr.rel (0) target = $region5
  $region4: #{static_heatmap_classifier_forward.3} parent=0 // pred_region
    _
  $region5: #{static_heatmap_classifier_forward.3} parent=0 // pred_fallthru
    _
  // Predicated region
  $region6: #{static_heatmap_classifier_forward.3} parent=0 // pred_check
    _
  $region7: #{static_heatmap_classifier_forward.3} parent=0 // pred_check_branch
    %11 = sbr.rel (0) target = $region9
  $region8: #{static_heatmap_classifier_forward.3} parent=0 // pred_region
    _
  $region9: #{static_heatmap_classifier_forward.3} parent=0 // pred_fallthru
    _
  // Predicated region
  $region10: #{static_heatmap_classifier_forward.3} parent=0 // pred_check
    _
  $region11: #{static_heatmap_classifier_forward.3} parent=0 // pred_check_branch
    %13 = sbr.rel (0) target = $region13
  $region12: #{static_heatmap_classifier_forward.3} parent=0 // pred_region
    _
  $region13: #{static_heatmap_classifier_forward.3} parent=0 // pred_fallthru
    _
  %v15 = vld [vmem:[%s0] sm:$0xff]
  %v16 = vld [vmem:[%s0 + $0x8] sm:$0xff]
  %v17 = vld [vmem:[%s0 + $0x10] sm:$0xff]
  %v18 = vld [vmem:[%s0 + $0x18] sm:$0xff]
  %v19 = vld [vmem:[%s0 + $0x20] sm:$0xff]
  %v20 = vld [vmem:[%s0 + $0x28] sm:$0xff]
  %v21 = vld [vmem:[%s0 + $0x30] sm:$0xff]
  %v22 = vld [vmem:[%s0 + $0x38] sm:$0xff]
  %v23 = vld [vmem:[%s0 + $0x40] sm:$0xff]
  %v24 = vld [vmem:[%s0 + $0x48] sm:$0xff]
  %v25 = vld [vmem:[%s0 + $0x50] sm:$0xff]
  %v26 = vld [vmem:[%s0 + $0x58] sm:$0xff]
  %v27 = vld [vmem:[%s0 + $0x60] sm:$0xff]
  %v28 = vld [vmem:[%s0 + $0x68] sm:$0xff]
  %v29 = vld [vmem:[%s0 + $0x70] sm:$0xff]
  %v30 = vld [vmem:[%s0 + $0x78] sm:$0xff]
  %v31 = vld [vmem:[%s0 + $0x80] sm:$0xff]
  %v32 = vld [vmem:[%s0 + $0x88] sm:$0xff]
  %v33 = vld [vmem:[%s0 + $0x90] sm:$0xff]
  %v34 = vld [vmem:[%s0 + $0x98] sm:$0xff]
  %v35 = vld [vmem:[%s0 + $0xa0] sm:$0xff]
  %v36 = vld [vmem:[%s0 + $0xa8] sm:$0xff]
  %v37 = vld [vmem:[%s0 + $0xb0] sm:$0xff]
  %v38 = vld [vmem:[%s0 + $0xb8] sm:$0xff]
  %v39 = vld [vmem:[%s0 + $0xc0] sm:$0xff]
  %v40 = vld [vmem:[%s0 + $0xc8] sm:$0xff]
  %v41 = vld [vmem:[%s0 + $0xd0] sm:$0xff]
  %v42 = vld [vmem:[%s0 + $0xd8] sm:$0xff]
  %v43 = vld [vmem:[%s0 + $0xe0] sm:$0xff]
  %v44 = vld [vmem:[%s0 + $0xe8] sm:$0xff]
  %v45 = vld [vmem:[%s0 + $0xf0] sm:$0xff]
  %v46 = vld [vmem:[%s0 + $0xf8] sm:$0xff]
  %v47 = vld [vmem:[%s0 + $0x100] sm:$0xff]
  %v48 = vld [vmem:[%s0 + $0x108] sm:$0xff]
  %v49 = vld [vmem:[%s0 + $0x110] sm:$0xff]
  %v50 = vld [vmem:[%s0 + $0x118] sm:$0xff]
  %v51 = vld [vmem:[%s0 + $0x120] sm:$0xff]
  %v52 = vld [vmem:[%s0 + $0x128] sm:$0xff]
  %v53 = vld [vmem:[%s0 + $0x130] sm:$0xff]
  %v54 = vld [vmem:[%s0 + $0x138] sm:$0xff]
  %v55 = vld [vmem:[%s0 + $0x140] sm:$0xff]
  %v56 = vld [vmem:[%s0 + $0x148] sm:$0xff]
  %v57 = vld [vmem:[%s0 + $0x150] sm:$0xff]
  %v58 = vld [vmem:[%s0 + $0x158] sm:$0xff]
  %v59 = vld [vmem:[%s0 + $0x160] sm:$0xff]
  %v60 = vld [vmem:[%s0 + $0x168] sm:$0xff]
  %v61 = vld [vmem:[%s0 + $0x170] sm:$0xff]
  %v62 = vld [vmem:[%s0 + $0x178] sm:$0xff]
  %v63 = vld [vmem:[%s0 + $0x180] sm:$0xff]
  %v64 = vld [vmem:[%s0 + $0x188] sm:$0xff]
  %v65 = vld [vmem:[%s0 + $0x190] sm:$0xff]
  %v66 = vld [vmem:[%s0 + $0x198] sm:$0xff]
  %v67 = vld [vmem:[%s0 + $0x1a0] sm:$0xff]
  %v68 = vld [vmem:[%s0 + $0x1a8] sm:$0xff]
  %v69 = vld [vmem:[%s0 + $0x1b0] sm:$0xff]
  %v70 = vld [vmem:[%s0 + $0x1b8] sm:$0xff]
  %v71 = vld [vmem:[%s0 + $0x1c0] sm:$0xff]
  %v72 = vld [vmem:[%s0 + $0x1c8] sm:$0xff]
  %v73 = vld [vmem:[%s0 + $0x1d0] sm:$0xff]
  %v74 = vld [vmem:[%s0 + $0x1d8] sm:$0xff]
  %v75 = vld [vmem:[%s0 + $0x1e0] sm:$0xff]
  %v76 = vld [vmem:[%s0 + $0x1e8] sm:$0xff]
  %v77 = vld [vmem:[%s0 + $0x1f0] sm:$0xff]
  %v78 = vld [vmem:[%s0 + $0x1f8] sm:$0xff]
  %v79 = vld [vmem:[%s1] sm:$0xf]
  %v80 = vld [vmem:[%s1 + $0x4] sm:$0xf]
  %v81 = vld [vmem:[%s1 + $0x8] sm:$0xf]
  %v82 = vld [vmem:[%s1 + $0xc] sm:$0xf]
  %v83 = vld [vmem:[%s1 + $0x10] sm:$0xf]
  %v84 = vld [vmem:[%s1 + $0x14] sm:$0xf]
  %v85 = vld [vmem:[%s1 + $0x18] sm:$0xf]
  %v86 = vld [vmem:[%s1 + $0x1c] sm:$0xf]
  %v87 = vld [vmem:[%s1 + $0x20] sm:$0xf]
  %v88 = vld [vmem:[%s1 + $0x24] sm:$0xf]
  %v89 = vld [vmem:[%s1 + $0x28] sm:$0xf]
  %v90 = vld [vmem:[%s1 + $0x2c] sm:$0xf]
  %v91 = vld [vmem:[%s1 + $0x30] sm:$0xf]
  %v92 = vld [vmem:[%s1 + $0x34] sm:$0xf]
  %v93 = vld [vmem:[%s1 + $0x38] sm:$0xf]
  %v94 = vld [vmem:[%s1 + $0x3c] sm:$0xf]
  %v95 = vld [vmem:[%s1 + $0x40] sm:$0xf]
  %v96 = vld [vmem:[%s1 + $0x44] sm:$0xf]
  %v97 = vld [vmem:[%s1 + $0x48] sm:$0x3]
  %v98 = vld [vmem:[%s2] sm:$0x1]
  %v100 = vlaneseq
  %v101 = vshrl.u32 %v100, 7
  %v102 = vsub.s32 0, %v101
  %v103 = vrot.slane %v98, %v102
  %v169 = vunpack.c.l.b16 %v15
  %v170 = vunpack.c.h.b16 %v15
  %v171 = vunpack.c.l.b16 %v16
  %v172 = vunpack.c.h.b16 %v16
  %v173 = vunpack.c.l.b16 %v17
  %v174 = vunpack.c.h.b16 %v17
  %v175 = vunpack.c.l.b16 %v18
  %v176 = vunpack.c.h.b16 %v18
  %v177 = vunpack.c.l.b16 %v19
  %v178 = vunpack.c.h.b16 %v19
  %v179 = vunpack.c.l.b16 %v20
  %v180 = vunpack.c.h.b16 %v20
  %v181 = vunpack.c.l.b16 %v21
  %v182 = vunpack.c.h.b16 %v21
  %v183 = vunpack.c.l.b16 %v22
  %v184 = vunpack.c.h.b16 %v22
  %v185 = vunpack.c.l.b16 %v23
  %v186 = vunpack.c.h.b16 %v23
  %v187 = vunpack.c.l.b16 %v24
  %v188 = vunpack.c.h.b16 %v24
  %v189 = vunpack.c.l.b16 %v25
  %v190 = vunpack.c.h.b16 %v25
  %v191 = vunpack.c.l.b16 %v26
  %v192 = vunpack.c.h.b16 %v26
  %v193 = vunpack.c.l.b16 %v27
  %v194 = vunpack.c.h.b16 %v27
  %v195 = vunpack.c.l.b16 %v28
  %v196 = vunpack.c.h.b16 %v28
  %v197 = vunpack.c.l.b16 %v29
  %v198 = vunpack.c.h.b16 %v29
  %v199 = vunpack.c.l.b16 %v30
  %v200 = vunpack.c.h.b16 %v30
  %v201 = vunpack.c.l.b16 %v31
  %v202 = vunpack.c.h.b16 %v31
  %v203 = vunpack.c.l.b16 %v32
  %v204 = vunpack.c.h.b16 %v32
  %v205 = vunpack.c.l.b16 %v33
  %v206 = vunpack.c.h.b16 %v33
  %v207 = vunpack.c.l.b16 %v34
  %v208 = vunpack.c.h.b16 %v34
  %v209 = vunpack.c.l.b16 %v35
  %v210 = vunpack.c.h.b16 %v35
  %v211 = vunpack.c.l.b16 %v36
  %v212 = vunpack.c.h.b16 %v36
  %v213 = vunpack.c.l.b16 %v37
  %v214 = vunpack.c.h.b16 %v37
  %v215 = vunpack.c.l.b16 %v38
  %v216 = vunpack.c.h.b16 %v38
  %v217 = vunpack.c.l.b16 %v39
  %v218 = vunpack.c.h.b16 %v39
  %v219 = vunpack.c.l.b16 %v40
  %v220 = vunpack.c.h.b16 %v40
  %v221 = vunpack.c.l.b16 %v41
  %v222 = vunpack.c.h.b16 %v41
  %v223 = vunpack.c.l.b16 %v42
  %v224 = vunpack.c.h.b16 %v42
  %v225 = vunpack.c.l.b16 %v43
  %v226 = vunpack.c.h.b16 %v43
  %v227 = vunpack.c.l.b16 %v44
  %v228 = vunpack.c.h.b16 %v44
  %v229 = vunpack.c.l.b16 %v45
  %v230 = vunpack.c.h.b16 %v45
  %v231 = vunpack.c.l.b16 %v46
  %v232 = vunpack.c.h.b16 %v46
  %v233 = vunpack.c.l.b16 %v47
  %v234 = vunpack.c.h.b16 %v47
  %v235 = vunpack.c.l.b16 %v48
  %v236 = vunpack.c.h.b16 %v48
  %v237 = vunpack.c.l.b16 %v49
  %v238 = vunpack.c.h.b16 %v49
  %v239 = vunpack.c.l.b16 %v50
  %v240 = vunpack.c.h.b16 %v50
  %v241 = vunpack.c.l.b16 %v51
  %v242 = vunpack.c.h.b16 %v51
  %v243 = vunpack.c.l.b16 %v52
  %v244 = vunpack.c.h.b16 %v52
  %v245 = vunpack.c.l.b16 %v53
  %v246 = vunpack.c.h.b16 %v53
  %v247 = vunpack.c.l.b16 %v54
  %v248 = vunpack.c.h.b16 %v54
  %v249 = vunpack.c.l.b16 %v55
  %v250 = vunpack.c.h.b16 %v55
  %v251 = vunpack.c.l.b16 %v56
  %v252 = vunpack.c.h.b16 %v56
  %v253 = vunpack.c.l.b16 %v57
  %v254 = vunpack.c.h.b16 %v57
  %v255 = vunpack.c.l.b16 %v58
  %v256 = vunpack.c.h.b16 %v58
  %v257 = vunpack.c.l.b16 %v59
  %v258 = vunpack.c.h.b16 %v59
  %v259 = vunpack.c.l.b16 %v60
  %v260 = vunpack.c.h.b16 %v60
  %v261 = vunpack.c.l.b16 %v61
  %v262 = vunpack.c.h.b16 %v61
  %v263 = vunpack.c.l.b16 %v62
  %v264 = vunpack.c.h.b16 %v62
  %v265 = vunpack.c.l.b16 %v63
  %v266 = vunpack.c.h.b16 %v63
  %v267 = vunpack.c.l.b16 %v64
  %v268 = vunpack.c.h.b16 %v64
  %v269 = vunpack.c.l.b16 %v65
  %v270 = vunpack.c.h.b16 %v65
  %v271 = vunpack.c.l.b16 %v66
  %v272 = vunpack.c.h.b16 %v66
  %v273 = vunpack.c.l.b16 %v67
  %v274 = vunpack.c.h.b16 %v67
  %v275 = vunpack.c.l.b16 %v68
  %v276 = vunpack.c.h.b16 %v68
  %v277 = vunpack.c.l.b16 %v69
  %v278 = vunpack.c.h.b16 %v69
  %v279 = vunpack.c.l.b16 %v70
  %v280 = vunpack.c.h.b16 %v70
  %v281 = vunpack.c.l.b16 %v71
  %v282 = vunpack.c.h.b16 %v71
  %v283 = vunpack.c.l.b16 %v72
  %v284 = vunpack.c.h.b16 %v72
  %v285 = vunpack.c.l.b16 %v73
  %v286 = vunpack.c.h.b16 %v73
  %v287 = vunpack.c.l.b16 %v74
  %v288 = vunpack.c.h.b16 %v74
  %v289 = vunpack.c.l.b16 %v75
  %v290 = vunpack.c.h.b16 %v75
  %v291 = vunpack.c.l.b16 %v76
  %v292 = vunpack.c.h.b16 %v76
  %v293 = vunpack.c.l.b16 %v77
  %v294 = vunpack.c.h.b16 %v77
  %v295 = vunpack.c.l.b16 %v78
  %v296 = vunpack.c.h.b16 %v78
  %v297 = vpack.c.b16 %v171, %v169
  %v298 = vpack.c.b16 %v172, %v170
  %v299 = vpack.c.b16 %v175, %v173
  %v300 = vpack.c.b16 %v176, %v174
  %v301 = vpack.c.b16 %v179, %v177
  %v302 = vpack.c.b16 %v180, %v178
  %v303 = vpack.c.b16 %v183, %v181
  %v304 = vpack.c.b16 %v184, %v182
  %v305 = vpack.c.b16 %v187, %v185
  %v306 = vpack.c.b16 %v188, %v186
  %v307 = vpack.c.b16 %v191, %v189
  %v308 = vpack.c.b16 %v192, %v190
  %v309 = vpack.c.b16 %v195, %v193
  %v310 = vpack.c.b16 %v196, %v194
  %v311 = vpack.c.b16 %v199, %v197
  %v312 = vpack.c.b16 %v200, %v198
  %v313 = vpack.c.b16 %v203, %v201
  %v314 = vpack.c.b16 %v204, %v202
  %v315 = vpack.c.b16 %v207, %v205
  %v316 = vpack.c.b16 %v208, %v206
  %v317 = vpack.c.b16 %v211, %v209
  %v318 = vpack.c.b16 %v212, %v210
  %v319 = vpack.c.b16 %v215, %v213
  %v320 = vpack.c.b16 %v216, %v214
  %v321 = vpack.c.b16 %v219, %v217
  %v322 = vpack.c.b16 %v220, %v218
  %v323 = vpack.c.b16 %v223, %v221
  %v324 = vpack.c.b16 %v224, %v222
  %v325 = vpack.c.b16 %v227, %v225
  %v326 = vpack.c.b16 %v228, %v226
  %v327 = vpack.c.b16 %v231, %v229
  %v328 = vpack.c.b16 %v232, %v230
  %v329 = vpack.c.b16 %v235, %v233
  %v330 = vpack.c.b16 %v236, %v234
  %v331 = vpack.c.b16 %v239, %v237
  %v332 = vpack.c.b16 %v240, %v238
  %v333 = vpack.c.b16 %v243, %v241
  %v334 = vpack.c.b16 %v244, %v242
  %v335 = vpack.c.b16 %v247, %v245
  %v336 = vpack.c.b16 %v248, %v246
  %v337 = vpack.c.b16 %v251, %v249
  %v338 = vpack.c.b16 %v252, %v250
  %v339 = vpack.c.b16 %v255, %v253
  %v340 = vpack.c.b16 %v256, %v254
  %v341 = vpack.c.b16 %v259, %v257
  %v342 = vpack.c.b16 %v260, %v258
  %v343 = vpack.c.b16 %v263, %v261
  %v344 = vpack.c.b16 %v264, %v262
  %v345 = vpack.c.b16 %v267, %v265
  %v346 = vpack.c.b16 %v268, %v266
  %v347 = vpack.c.b16 %v271, %v269
  %v348 = vpack.c.b16 %v272, %v270
  %v349 = vpack.c.b16 %v275, %v273
  %v350 = vpack.c.b16 %v276, %v274
  %v351 = vpack.c.b16 %v279, %v277
  %v352 = vpack.c.b16 %v280, %v278
  %v353 = vpack.c.b16 %v283, %v281
  %v354 = vpack.c.b16 %v284, %v282
  %v355 = vpack.c.b16 %v287, %v285
  %v356 = vpack.c.b16 %v288, %v286
  %v357 = vpack.c.b16 %v291, %v289
  %v358 = vpack.c.b16 %v292, %v290
  %v359 = vpack.c.b16 %v295, %v293
  %v360 = vpack.c.b16 %v296, %v294
  %v412 = vunpack.c.l.b16 %v79
  %v413 = vunpack.c.l.b16 %v80
  %v414 = vunpack.c.l.b16 %v81
  %v415 = vunpack.c.l.b16 %v82
  %v416 = vunpack.c.l.b16 %v83
  %v417 = vunpack.c.l.b16 %v84
  %v418 = vunpack.c.l.b16 %v85
  %v419 = vunpack.c.l.b16 %v86
  %v420 = vunpack.c.l.b16 %v87
  %v421 = vunpack.c.l.b16 %v88
  %v422 = vunpack.c.l.b16 %v89
  %v423 = vunpack.c.l.b16 %v90
  %v424 = vunpack.c.l.b16 %v91
  %v425 = vunpack.c.l.b16 %v92
  %v426 = vunpack.c.l.b16 %v93
  %v427 = vunpack.c.l.b16 %v94
  %v428 = vunpack.c.l.b16 %v95
  %v429 = vunpack.c.l.b16 %v96
  %v430 = vunpack.c.l.b16 %v97
  %v431 = vpack.c.b16 %v413, %v412
  %v432 = vpack.c.b16 %v415, %v414
  %v433 = vpack.c.b16 %v417, %v416
  %v434 = vpack.c.b16 %v419, %v418
  %v435 = vpack.c.b16 %v421, %v420
  %v436 = vpack.c.b16 %v423, %v422
  %v437 = vpack.c.b16 %v425, %v424
  %v438 = vpack.c.b16 %v427, %v426
  %v439 = vpack.c.b16 %v429, %v428
  %v440 = vpack.c.b16 %v430, %v430
  %vm450 = vcmask 154624
  %v452 = vsel %vm450, %v298, 0
  %v455 = vsel %vm450, %v300, 0
  %v458 = vsel %vm450, %v302, 0
  %v461 = vsel %vm450, %v304, 0
  %v464 = vsel %vm450, %v306, 0
  %v467 = vsel %vm450, %v308, 0
  %v470 = vsel %vm450, %v310, 0
  %v473 = vsel %vm450, %v312, 0
  %v476 = vsel %vm450, %v314, 0
  %v479 = vsel %vm450, %v316, 0
  %v482 = vsel %vm450, %v318, 0
  %v485 = vsel %vm450, %v320, 0
  %v488 = vsel %vm450, %v322, 0
  %v491 = vsel %vm450, %v324, 0
  %v494 = vsel %vm450, %v326, 0
  %v497 = vsel %vm450, %v328, 0
  %v500 = vsel %vm450, %v330, 0
  %v503 = vsel %vm450, %v332, 0
  %v506 = vsel %vm450, %v334, 0
  %v509 = vsel %vm450, %v336, 0
  %v512 = vsel %vm450, %v338, 0
  %v515 = vsel %vm450, %v340, 0
  %v518 = vsel %vm450, %v342, 0
  %v521 = vsel %vm450, %v344, 0
  %v524 = vsel %vm450, %v346, 0
  %v527 = vsel %vm450, %v348, 0
  %v530 = vsel %vm450, %v350, 0
  %v533 = vsel %vm450, %v352, 0
  %v536 = vsel %vm450, %v354, 0
  %v539 = vsel %vm450, %v356, 0
  %v542 = vsel %vm450, %v358, 0
  %v545 = vsel %vm450, %v360, 0
  %vm547 = vcmask 1040384
  %vm548 = vcmask 1041408
  %v549 = vsel %vm547, 4294967295, 65535
  %v550 = vsel %vm548, %v549, 0
  %v552 = vand.u32 %v440, %v550
  %554 = vmatprep.subr.bf16.mxu0 0
  %555 = vmatpush1.bf16.msra.mxu0 %v438
  %556 = vmatprep.subr.bf16.mxu0 0
  %557 = vmatpush1.bf16.msra.mxu0 %v437
  %558 = vmatprep.subr.bf16.mxu0 0
  %559 = vmatpush1.bf16.msra.mxu0 %v436
  %560 = vmatprep.subr.bf16.mxu0 0
  %561 = vmatpush1.bf16.msra.mxu0 %v435
  %562 = vmatprep.subr.bf16.mxu0 0
  %563 = vmatpush1.bf16.msra.mxu0 %v434
  %564 = vmatprep.subr.bf16.mxu0 0
  %565 = vmatpush1.bf16.msra.mxu0 %v433
  %566 = vmatprep.subr.bf16.mxu0 0
  %567 = vmatpush1.bf16.msra.mxu0 %v432
  %568 = vmatprep.subr.bf16.mxu0 0
  %569 = vmatpush1.bf16.msra.mxu0 %v431
  %570 = vmatprep.subr.bf16.mxu0 0
  %571 = vmatpush2.bf16.msra.mxu0 0
  %572 = vmatprep.subr.bf16.mxu0 0
  %573 = vmatpush2.bf16.msra.mxu0 0
  %574 = vmatprep.subr.bf16.mxu0 0
  %575 = vmatpush2.bf16.msra.mxu0 0
  %576 = vmatprep.subr.bf16.mxu0 0
  %577 = vmatpush2.bf16.msra.mxu0 0
  %578 = vmatprep.subr.bf16.mxu0 0
  %579 = vmatpush2.bf16.msra.mxu0 0
  %580 = vmatprep.subr.bf16.mxu0 0
  %581 = vmatpush2.bf16.msra.mxu0 0
  %582 = vmatprep.subr.bf16.mxu0 0
  %583 = vmatpush2.bf16.msra.mxu0 %v552
  %584 = vmatprep.subr.bf16.mxu0 0
  %585 = vmatpush2.bf16.msra.mxu0 %v439
  %586 = vmatprep.mubr.bf16.mxu0 %v452
  %587 = vmatmul.mubr.bf16.gmra.mxu0 %v297
  %v588 = vpop.f32.mrf.mxu0
  %v589 = vadd.f32 %v103, %v588
  %v590 = vpop.f32.mrf.mxu0
  %v591 = vpop.f32.mrf.mxu0
  %v592 = vadd.f32 %v103, %v591
  %v593 = vpop.f32.mrf.mxu0
  %594 = vmatprep.mubr.bf16.mxu0 %v455
  %595 = vmatmul.mubr.bf16.gmra.mxu0 %v299
  %v596 = vpop.f32.mrf.mxu0
  %v597 = vadd.f32 %v103, %v596
  %v598 = vpop.f32.mrf.mxu0
  %v599 = vpop.f32.mrf.mxu0
  %v600 = vadd.f32 %v103, %v599
  %v601 = vpop.f32.mrf.mxu0
  %602 = vmatprep.mubr.bf16.mxu0 %v458
  %603 = vmatmul.mubr.bf16.gmra.mxu0 %v301
  %v604 = vpop.f32.mrf.mxu0
  %v605 = vadd.f32 %v103, %v604
  %v606 = vpop.f32.mrf.mxu0
  %v607 = vpop.f32.mrf.mxu0
  %v608 = vadd.f32 %v103, %v607
  %v609 = vpop.f32.mrf.mxu0
  %610 = vmatprep.mubr.bf16.mxu0 %v461
  %611 = vmatmul.mubr.bf16.gmra.mxu0 %v303
  %v612 = vpop.f32.mrf.mxu0
  %v613 = vadd.f32 %v103, %v612
  %v614 = vpop.f32.mrf.mxu0
  %v615 = vpop.f32.mrf.mxu0
  %v616 = vadd.f32 %v103, %v615
  %v617 = vpop.f32.mrf.mxu0
  %618 = vmatprep.mubr.bf16.mxu0 %v464
  %619 = vmatmul.mubr.bf16.gmra.mxu0 %v305
  %v620 = vpop.f32.mrf.mxu0
  %v621 = vadd.f32 %v103, %v620
  %v622 = vpop.f32.mrf.mxu0
  %v623 = vpop.f32.mrf.mxu0
  %v624 = vadd.f32 %v103, %v623
  %v625 = vpop.f32.mrf.mxu0
  %626 = vmatprep.mubr.bf16.mxu0 %v467
  %627 = vmatmul.mubr.bf16.gmra.mxu0 %v307
  %v628 = vpop.f32.mrf.mxu0
  %v629 = vadd.f32 %v103, %v628
  %v630 = vpop.f32.mrf.mxu0
  %v631 = vpop.f32.mrf.mxu0
  %v632 = vadd.f32 %v103, %v631
  %v633 = vpop.f32.mrf.mxu0
  %634 = vmatprep.mubr.bf16.mxu0 %v470
  %635 = vmatmul.mubr.bf16.gmra.mxu0 %v309
  %v636 = vpop.f32.mrf.mxu0
  %v637 = vadd.f32 %v103, %v636
  %v638 = vpop.f32.mrf.mxu0
  %v639 = vpop.f32.mrf.mxu0
  %v640 = vadd.f32 %v103, %v639
  %v641 = vpop.f32.mrf.mxu0
  %642 = vmatprep.mubr.bf16.mxu0 %v473
  %643 = vmatmul.mubr.bf16.gmra.mxu0 %v311
  %v644 = vpop.f32.mrf.mxu0
  %v645 = vadd.f32 %v103, %v644
  %v646 = vpop.f32.mrf.mxu0
  %v647 = vpop.f32.mrf.mxu0
  %v648 = vadd.f32 %v103, %v647
  %v649 = vpop.f32.mrf.mxu0
  %650 = vmatprep.mubr.bf16.mxu0 %v476
  %651 = vmatmul.mubr.bf16.gmra.mxu0 %v313
  %v652 = vpop.f32.mrf.mxu0
  %v653 = vadd.f32 %v103, %v652
  %v654 = vpop.f32.mrf.mxu0
  %v655 = vpop.f32.mrf.mxu0
  %v656 = vadd.f32 %v103, %v655
  %v657 = vpop.f32.mrf.mxu0
  %658 = vmatprep.mubr.bf16.mxu0 %v479
  %659 = vmatmul.mubr.bf16.gmra.mxu0 %v315
  %v660 = vpop.f32.mrf.mxu0
  %v661 = vadd.f32 %v103, %v660
  %v662 = vpop.f32.mrf.mxu0
  %v663 = vpop.f32.mrf.mxu0
  %v664 = vadd.f32 %v103, %v663
  %v665 = vpop.f32.mrf.mxu0
  %666 = vmatprep.mubr.bf16.mxu0 %v482
  %667 = vmatmul.mubr.bf16.gmra.mxu0 %v317
  %v668 = vpop.f32.mrf.mxu0
  %v669 = vadd.f32 %v103, %v668
  %v670 = vpop.f32.mrf.mxu0
  %v671 = vpop.f32.mrf.mxu0
  %v672 = vadd.f32 %v103, %v671
  %v673 = vpop.f32.mrf.mxu0
  %674 = vmatprep.mubr.bf16.mxu0 %v485
  %675 = vmatmul.mubr.bf16.gmra.mxu0 %v319
  %v676 = vpop.f32.mrf.mxu0
  %v677 = vadd.f32 %v103, %v676
  %v678 = vpop.f32.mrf.mxu0
  %v679 = vpop.f32.mrf.mxu0
  %v680 = vadd.f32 %v103, %v679
  %v681 = vpop.f32.mrf.mxu0
  %682 = vmatprep.mubr.bf16.mxu0 %v488
  %683 = vmatmul.mubr.bf16.gmra.mxu0 %v321
  %v684 = vpop.f32.mrf.mxu0
  %v685 = vadd.f32 %v103, %v684
  %v686 = vpop.f32.mrf.mxu0
  %v687 = vpop.f32.mrf.mxu0
  %v688 = vadd.f32 %v103, %v687
  %v689 = vpop.f32.mrf.mxu0
  %690 = vmatprep.mubr.bf16.mxu0 %v491
  %691 = vmatmul.mubr.bf16.gmra.mxu0 %v323
  %v692 = vpop.f32.mrf.mxu0
  %v693 = vadd.f32 %v103, %v692
  %v694 = vpop.f32.mrf.mxu0
  %v695 = vpop.f32.mrf.mxu0
  %v696 = vadd.f32 %v103, %v695
  %v697 = vpop.f32.mrf.mxu0
  %698 = vmatprep.mubr.bf16.mxu0 %v494
  %699 = vmatmul.mubr.bf16.gmra.mxu0 %v325
  %v700 = vpop.f32.mrf.mxu0
  %v701 = vadd.f32 %v103, %v700
  %v702 = vpop.f32.mrf.mxu0
  %v703 = vpop.f32.mrf.mxu0
  %v704 = vadd.f32 %v103, %v703
  %v705 = vpop.f32.mrf.mxu0
  %706 = vmatprep.mubr.bf16.mxu0 %v497
  %707 = vmatmul.mubr.bf16.gmra.mxu0 %v327
  %v708 = vpop.f32.mrf.mxu0
  %v709 = vadd.f32 %v103, %v708
  %v710 = vpop.f32.mrf.mxu0
  %v711 = vpop.f32.mrf.mxu0
  %v712 = vadd.f32 %v103, %v711
  %v713 = vpop.f32.mrf.mxu0
  %714 = vmatprep.mubr.bf16.mxu0 %v500
  %715 = vmatmul.mubr.bf16.gmra.mxu0 %v329
  %v716 = vpop.f32.mrf.mxu0
  %v717 = vadd.f32 %v103, %v716
  %v718 = vpop.f32.mrf.mxu0
  %v719 = vpop.f32.mrf.mxu0
  %v720 = vadd.f32 %v103, %v719
  %v721 = vpop.f32.mrf.mxu0
  %722 = vmatprep.mubr.bf16.mxu0 %v503
  %723 = vmatmul.mubr.bf16.gmra.mxu0 %v331
  %v724 = vpop.f32.mrf.mxu0
  %v725 = vadd.f32 %v103, %v724
  %v726 = vpop.f32.mrf.mxu0
  %v727 = vpop.f32.mrf.mxu0
  %v728 = vadd.f32 %v103, %v727
  %v729 = vpop.f32.mrf.mxu0
  %730 = vmatprep.mubr.bf16.mxu0 %v506
  %731 = vmatmul.mubr.bf16.gmra.mxu0 %v333
  %v732 = vpop.f32.mrf.mxu0
  %v733 = vadd.f32 %v103, %v732
  %v734 = vpop.f32.mrf.mxu0
  %v735 = vpop.f32.mrf.mxu0
  %v736 = vadd.f32 %v103, %v735
  %v737 = vpop.f32.mrf.mxu0
  %738 = vmatprep.mubr.bf16.mxu0 %v509
  %739 = vmatmul.mubr.bf16.gmra.mxu0 %v335
  %v740 = vpop.f32.mrf.mxu0
  %v741 = vadd.f32 %v103, %v740
  %v742 = vpop.f32.mrf.mxu0
  %v743 = vpop.f32.mrf.mxu0
  %v744 = vadd.f32 %v103, %v743
  %v745 = vpop.f32.mrf.mxu0
  %746 = vmatprep.mubr.bf16.mxu0 %v512
  %747 = vmatmul.mubr.bf16.gmra.mxu0 %v337
  %v748 = vpop.f32.mrf.mxu0
  %v749 = vadd.f32 %v103, %v748
  %v750 = vpop.f32.mrf.mxu0
  %v751 = vpop.f32.mrf.mxu0
  %v752 = vadd.f32 %v103, %v751
  %v753 = vpop.f32.mrf.mxu0
  %754 = vmatprep.mubr.bf16.mxu0 %v515
  %755 = vmatmul.mubr.bf16.gmra.mxu0 %v339
  %v756 = vpop.f32.mrf.mxu0
  %v757 = vadd.f32 %v103, %v756
  %v758 = vpop.f32.mrf.mxu0
  %v759 = vpop.f32.mrf.mxu0
  %v760 = vadd.f32 %v103, %v759
  %v761 = vpop.f32.mrf.mxu0
  %762 = vmatprep.mubr.bf16.mxu0 %v518
  %763 = vmatmul.mubr.bf16.gmra.mxu0 %v341
  %v764 = vpop.f32.mrf.mxu0
  %v765 = vadd.f32 %v103, %v764
  %v766 = vpop.f32.mrf.mxu0
  %v767 = vpop.f32.mrf.mxu0
  %v768 = vadd.f32 %v103, %v767
  %v769 = vpop.f32.mrf.mxu0
  %770 = vmatprep.mubr.bf16.mxu0 %v521
  %771 = vmatmul.mubr.bf16.gmra.mxu0 %v343
  %v772 = vpop.f32.mrf.mxu0
  %v773 = vadd.f32 %v103, %v772
  %v774 = vpop.f32.mrf.mxu0
  %v775 = vpop.f32.mrf.mxu0
  %v776 = vadd.f32 %v103, %v775
  %v777 = vpop.f32.mrf.mxu0
  %778 = vmatprep.mubr.bf16.mxu0 %v524
  %779 = vmatmul.mubr.bf16.gmra.mxu0 %v345
  %v780 = vpop.f32.mrf.mxu0
  %v781 = vadd.f32 %v103, %v780
  %v782 = vpop.f32.mrf.mxu0
  %v783 = vpop.f32.mrf.mxu0
  %v784 = vadd.f32 %v103, %v783
  %v785 = vpop.f32.mrf.mxu0
  %786 = vmatprep.mubr.bf16.mxu0 %v527
  %787 = vmatmul.mubr.bf16.gmra.mxu0 %v347
  %v788 = vpop.f32.mrf.mxu0
  %v789 = vadd.f32 %v103, %v788
  %v790 = vpop.f32.mrf.mxu0
  %v791 = vpop.f32.mrf.mxu0
  %v792 = vadd.f32 %v103, %v791
  %v793 = vpop.f32.mrf.mxu0
  %794 = vmatprep.mubr.bf16.mxu0 %v530
  %795 = vmatmul.mubr.bf16.gmra.mxu0 %v349
  %v796 = vpop.f32.mrf.mxu0
  %v797 = vadd.f32 %v103, %v796
  %v798 = vpop.f32.mrf.mxu0
  %v799 = vpop.f32.mrf.mxu0
  %v800 = vadd.f32 %v103, %v799
  %v801 = vpop.f32.mrf.mxu0
  %802 = vmatprep.mubr.bf16.mxu0 %v533
  %803 = vmatmul.mubr.bf16.gmra.mxu0 %v351
  %v804 = vpop.f32.mrf.mxu0
  %v805 = vadd.f32 %v103, %v804
  %v806 = vpop.f32.mrf.mxu0
  %v807 = vpop.f32.mrf.mxu0
  %v808 = vadd.f32 %v103, %v807
  %v809 = vpop.f32.mrf.mxu0
  %810 = vmatprep.mubr.bf16.mxu0 %v536
  %811 = vmatmul.mubr.bf16.gmra.mxu0 %v353
  %v812 = vpop.f32.mrf.mxu0
  %v813 = vadd.f32 %v103, %v812
  %v814 = vpop.f32.mrf.mxu0
  %v815 = vpop.f32.mrf.mxu0
  %v816 = vadd.f32 %v103, %v815
  %v817 = vpop.f32.mrf.mxu0
  %818 = vmatprep.mubr.bf16.mxu0 %v539
  %819 = vmatmul.mubr.bf16.gmra.mxu0 %v355
  %v820 = vpop.f32.mrf.mxu0
  %v821 = vadd.f32 %v103, %v820
  %v822 = vpop.f32.mrf.mxu0
  %v823 = vpop.f32.mrf.mxu0
  %v824 = vadd.f32 %v103, %v823
  %v825 = vpop.f32.mrf.mxu0
  %826 = vmatprep.mubr.bf16.mxu0 %v542
  %827 = vmatmul.mubr.bf16.gmra.mxu0 %v357
  %v828 = vpop.f32.mrf.mxu0
  %v829 = vadd.f32 %v103, %v828
  %v830 = vpop.f32.mrf.mxu0
  %v831 = vpop.f32.mrf.mxu0
  %v832 = vadd.f32 %v103, %v831
  %v833 = vpop.f32.mrf.mxu0
  %834 = vmatprep.mubr.bf16.mxu0 %v545
  %835 = vmatmul.mubr.bf16.gmra.mxu0 %v359
  %v836 = vpop.f32.mrf.mxu0
  %v837 = vadd.f32 %v103, %v836
  %v838 = vpop.f32.mrf.mxu0
  %v839 = vpop.f32.mrf.mxu0
  %v840 = vadd.f32 %v103, %v839
  %v841 = vpop.f32.mrf.mxu0
  %842 = vdwg.mxu0
  %v843 = vmax.f32 %v589, 0.0
  %v844 = vmax.f32 %v592, 0.0
  %v845 = vmax.f32 %v597, 0.0
  %v846 = vmax.f32 %v600, 0.0
  %v847 = vmax.f32 %v605, 0.0
  %v848 = vmax.f32 %v608, 0.0
  %v849 = vmax.f32 %v613, 0.0
  %v850 = vmax.f32 %v616, 0.0
  %v851 = vmax.f32 %v621, 0.0
  %v852 = vmax.f32 %v624, 0.0
  %v853 = vmax.f32 %v629, 0.0
  %v854 = vmax.f32 %v632, 0.0
  %v855 = vmax.f32 %v637, 0.0
  %v856 = vmax.f32 %v640, 0.0
  %v857 = vmax.f32 %v645, 0.0
  %v858 = vmax.f32 %v648, 0.0
  %v859 = vmax.f32 %v653, 0.0
  %v860 = vmax.f32 %v656, 0.0
  %v861 = vmax.f32 %v661, 0.0
  %v862 = vmax.f32 %v664, 0.0
  %v863 = vmax.f32 %v669, 0.0
  %v864 = vmax.f32 %v672, 0.0
  %v865 = vmax.f32 %v677, 0.0
  %v866 = vmax.f32 %v680, 0.0
  %v867 = vmax.f32 %v685, 0.0
  %v868 = vmax.f32 %v688, 0.0
  %v869 = vmax.f32 %v693, 0.0
  %v870 = vmax.f32 %v696, 0.0
  %v871 = vmax.f32 %v701, 0.0
  %v872 = vmax.f32 %v704, 0.0
  %v873 = vmax.f32 %v709, 0.0
  %v874 = vmax.f32 %v712, 0.0
  %v875 = vmax.f32 %v717, 0.0
  %v876 = vmax.f32 %v720, 0.0
  %v877 = vmax.f32 %v725, 0.0
  %v878 = vmax.f32 %v728, 0.0
  %v879 = vmax.f32 %v733, 0.0
  %v880 = vmax.f32 %v736, 0.0
  %v881 = vmax.f32 %v741, 0.0
  %v882 = vmax.f32 %v744, 0.0
  %v883 = vmax.f32 %v749, 0.0
  %v884 = vmax.f32 %v752, 0.0
  %v885 = vmax.f32 %v757, 0.0
  %v886 = vmax.f32 %v760, 0.0
  %v887 = vmax.f32 %v765, 0.0
  %v888 = vmax.f32 %v768, 0.0
  %v889 = vmax.f32 %v773, 0.0
  %v890 = vmax.f32 %v776, 0.0
  %v891 = vmax.f32 %v781, 0.0
  %v892 = vmax.f32 %v784, 0.0
  %v893 = vmax.f32 %v789, 0.0
  %v894 = vmax.f32 %v792, 0.0
  %v895 = vmax.f32 %v797, 0.0
  %v896 = vmax.f32 %v800, 0.0
  %v897 = vmax.f32 %v805, 0.0
  %v898 = vmax.f32 %v808, 0.0
  %v899 = vmax.f32 %v813, 0.0
  %v900 = vmax.f32 %v816, 0.0
  %v901 = vmax.f32 %v821, 0.0
  %v902 = vmax.f32 %v824, 0.0
  %v903 = vmax.f32 %v829, 0.0
  %v904 = vmax.f32 %v832, 0.0
  %v905 = vmax.f32 %v837, 0.0
  %v906 = vmax.f32 %v840, 0.0
  %v907 = vpack.c.bf16 %v844, %v843
  %v908 = vpack.c.bf16 %v846, %v845
  %v909 = vpack.c.bf16 %v848, %v847
  %v910 = vpack.c.bf16 %v850, %v849
  %v911 = vpack.c.bf16 %v852, %v851
  %v912 = vpack.c.bf16 %v854, %v853
  %v913 = vpack.c.bf16 %v856, %v855
  %v914 = vpack.c.bf16 %v858, %v857
  %v915 = vpack.c.bf16 %v860, %v859
  %v916 = vpack.c.bf16 %v862, %v861
  %v917 = vpack.c.bf16 %v864, %v863
  %v918 = vpack.c.bf16 %v866, %v865
  %v919 = vpack.c.bf16 %v868, %v867
  %v920 = vpack.c.bf16 %v870, %v869
  %v921 = vpack.c.bf16 %v872, %v871
  %v922 = vpack.c.bf16 %v874, %v873
  %v923 = vpack.c.bf16 %v876, %v875
  %v924 = vpack.c.bf16 %v878, %v877
  %v925 = vpack.c.bf16 %v880, %v879
  %v926 = vpack.c.bf16 %v882, %v881
  %v927 = vpack.c.bf16 %v884, %v883
  %v928 = vpack.c.bf16 %v886, %v885
  %v929 = vpack.c.bf16 %v888, %v887
  %v930 = vpack.c.bf16 %v890, %v889
  %v931 = vpack.c.bf16 %v892, %v891
  %v932 = vpack.c.bf16 %v894, %v893
  %v933 = vpack.c.bf16 %v896, %v895
  %v934 = vpack.c.bf16 %v898, %v897
  %v935 = vpack.c.bf16 %v900, %v899
  %v936 = vpack.c.bf16 %v902, %v901
  %v937 = vpack.c.bf16 %v904, %v903
  %v938 = vpack.c.bf16 %v906, %v905
  %v971 = vunpack.c.l.b16 %v907
  %v972 = vunpack.c.h.b16 %v907
  %v973 = vunpack.c.l.b16 %v908
  %v974 = vunpack.c.h.b16 %v908
  %v975 = vunpack.c.l.b16 %v909
  %v976 = vunpack.c.h.b16 %v909
  %v977 = vunpack.c.l.b16 %v910
  %v978 = vunpack.c.h.b16 %v910
  %v979 = vunpack.c.l.b16 %v911
  %v980 = vunpack.c.h.b16 %v911
  %v981 = vunpack.c.l.b16 %v912
  %v982 = vunpack.c.h.b16 %v912
  %v983 = vunpack.c.l.b16 %v913
  %v984 = vunpack.c.h.b16 %v913
  %v985 = vunpack.c.l.b16 %v914
  %v986 = vunpack.c.h.b16 %v914
  %v987 = vunpack.c.l.b16 %v915
  %v988 = vunpack.c.h.b16 %v915
  %v989 = vunpack.c.l.b16 %v916
  %v990 = vunpack.c.h.b16 %v916
  %v991 = vunpack.c.l.b16 %v917
  %v992 = vunpack.c.h.b16 %v917
  %v993 = vunpack.c.l.b16 %v918
  %v994 = vunpack.c.h.b16 %v918
  %v995 = vunpack.c.l.b16 %v919
  %v996 = vunpack.c.h.b16 %v919
  %v997 = vunpack.c.l.b16 %v920
  %v998 = vunpack.c.h.b16 %v920
  %v999 = vunpack.c.l.b16 %v921
  %v1000 = vunpack.c.h.b16 %v921
  %v1001 = vunpack.c.l.b16 %v922
  %v1002 = vunpack.c.h.b16 %v922
  %v1003 = vunpack.c.l.b16 %v923
  %v1004 = vunpack.c.h.b16 %v923
  %v1005 = vunpack.c.l.b16 %v924
  %v1006 = vunpack.c.h.b16 %v924
  %v1007 = vunpack.c.l.b16 %v925
  %v1008 = vunpack.c.h.b16 %v925
  %v1009 = vunpack.c.l.b16 %v926
  %v1010 = vunpack.c.h.b16 %v926
  %v1011 = vunpack.c.l.b16 %v927
  %v1012 = vunpack.c.h.b16 %v927
  %v1013 = vunpack.c.l.b16 %v928
  %v1014 = vunpack.c.h.b16 %v928
  %v1015 = vunpack.c.l.b16 %v929
  %v1016 = vunpack.c.h.b16 %v929
  %v1017 = vunpack.c.l.b16 %v930
  %v1018 = vunpack.c.h.b16 %v930
  %v1019 = vunpack.c.l.b16 %v931
  %v1020 = vunpack.c.h.b16 %v931
  %v1021 = vunpack.c.l.b16 %v932
  %v1022 = vunpack.c.h.b16 %v932
  %v1023 = vunpack.c.l.b16 %v933
  %v1024 = vunpack.c.h.b16 %v933
  %v1025 = vunpack.c.l.b16 %v934
  %v1026 = vunpack.c.h.b16 %v934
  %v1027 = vunpack.c.l.b16 %v935
  %v1028 = vunpack.c.h.b16 %v935
  %v1029 = vunpack.c.l.b16 %v936
  %v1030 = vunpack.c.h.b16 %v936
  %v1031 = vunpack.c.l.b16 %v937
  %v1032 = vunpack.c.h.b16 %v937
  %v1033 = vunpack.c.l.b16 %v938
  %v1034 = vunpack.c.h.b16 %v938
  %v1035 = vpack.c.b16 %v971, %v971
  %v1036 = vpack.c.b16 %v972, %v972
  %v1037 = vpack.c.b16 %v973, %v973
  %v1038 = vpack.c.b16 %v974, %v974
  %v1039 = vpack.c.b16 %v975, %v975
  %v1040 = vpack.c.b16 %v976, %v976
  %v1041 = vpack.c.b16 %v977, %v977
  %v1042 = vpack.c.b16 %v978, %v978
  %v1043 = vpack.c.b16 %v979, %v979
  %v1044 = vpack.c.b16 %v980, %v980
  %v1045 = vpack.c.b16 %v981, %v981
  %v1046 = vpack.c.b16 %v982, %v982
  %v1047 = vpack.c.b16 %v983, %v983
  %v1048 = vpack.c.b16 %v984, %v984
  %v1049 = vpack.c.b16 %v985, %v985
  %v1050 = vpack.c.b16 %v986, %v986
  %v1051 = vpack.c.b16 %v987, %v987
  %v1052 = vpack.c.b16 %v988, %v988
  %v1053 = vpack.c.b16 %v989, %v989
  %v1054 = vpack.c.b16 %v990, %v990
  %v1055 = vpack.c.b16 %v991, %v991
  %v1056 = vpack.c.b16 %v992, %v992
  %v1057 = vpack.c.b16 %v993, %v993
  %v1058 = vpack.c.b16 %v994, %v994
  %v1059 = vpack.c.b16 %v995, %v995
  %v1060 = vpack.c.b16 %v996, %v996
  %v1061 = vpack.c.b16 %v997, %v997
  %v1062 = vpack.c.b16 %v998, %v998
  %v1063 = vpack.c.b16 %v999, %v999
  %v1064 = vpack.c.b16 %v1000, %v1000
  %v1065 = vpack.c.b16 %v1001, %v1001
  %v1066 = vpack.c.b16 %v1002, %v1002
  %v1067 = vpack.c.b16 %v1003, %v1003
  %v1068 = vpack.c.b16 %v1004, %v1004
  %v1069 = vpack.c.b16 %v1005, %v1005
  %v1070 = vpack.c.b16 %v1006, %v1006
  %v1071 = vpack.c.b16 %v1007, %v1007
  %v1072 = vpack.c.b16 %v1008, %v1008
  %v1073 = vpack.c.b16 %v1009, %v1009
  %v1074 = vpack.c.b16 %v1010, %v1010
  %v1075 = vpack.c.b16 %v1011, %v1011
  %v1076 = vpack.c.b16 %v1012, %v1012
  %v1077 = vpack.c.b16 %v1013, %v1013
  %v1078 = vpack.c.b16 %v1014, %v1014
  %v1079 = vpack.c.b16 %v1015, %v1015
  %v1080 = vpack.c.b16 %v1016, %v1016
  %v1081 = vpack.c.b16 %v1017, %v1017
  %v1082 = vpack.c.b16 %v1018, %v1018
  %v1083 = vpack.c.b16 %v1019, %v1019
  %v1084 = vpack.c.b16 %v1020, %v1020
  %v1085 = vpack.c.b16 %v1021, %v1021
  %v1086 = vpack.c.b16 %v1022, %v1022
  %v1087 = vpack.c.b16 %v1023, %v1023
  %v1088 = vpack.c.b16 %v1024, %v1024
  %v1089 = vpack.c.b16 %v1025, %v1025
  %v1090 = vpack.c.b16 %v1026, %v1026
  %v1091 = vpack.c.b16 %v1027, %v1027
  %v1092 = vpack.c.b16 %v1028, %v1028
  %v1093 = vpack.c.b16 %v1029, %v1029
  %v1094 = vpack.c.b16 %v1030, %v1030
  %v1095 = vpack.c.b16 %v1031, %v1031
  %v1096 = vpack.c.b16 %v1032, %v1032
  %v1097 = vpack.c.b16 %v1033, %v1033
  %v1098 = vpack.c.b16 %v1034, %v1034
  %1163 = vst [vmem:[%s3] sm:$0xf] %v1035
  %1164 = vst [vmem:[%s3 + $0x4] sm:$0xf] %v1036
  %1165 = vst [vmem:[%s3 + $0x8] sm:$0xf] %v1037
  %1166 = vst [vmem:[%s3 + $0xc] sm:$0xf] %v1038
  %1167 = vst [vmem:[%s3 + $0x10] sm:$0xf] %v1039
  %1168 = vst [vmem:[%s3 + $0x14] sm:$0xf] %v1040
  %1169 = vst [vmem:[%s3 + $0x18] sm:$0xf] %v1041
  %1170 = vst [vmem:[%s3 + $0x1c] sm:$0xf] %v1042
  %1171 = vst [vmem:[%s3 + $0x20] sm:$0xf] %v1043
  %1172 = vst [vmem:[%s3 + $0x24] sm:$0xf] %v1044
  %1173 = vst [vmem:[%s3 + $0x28] sm:$0xf] %v1045
  %1174 = vst [vmem:[%s3 + $0x2c] sm:$0xf] %v1046
  %1175 = vst [vmem:[%s3 + $0x30] sm:$0xf] %v1047
  %1176 = vst [vmem:[%s3 + $0x34] sm:$0xf] %v1048
  %1177 = vst [vmem:[%s3 + $0x38] sm:$0xf] %v1049
  %1178 = vst [vmem:[%s3 + $0x3c] sm:$0xf] %v1050
  %1179 = vst [vmem:[%s3 + $0x40] sm:$0xf] %v1051
  %1180 = vst [vmem:[%s3 + $0x44] sm:$0xf] %v1052
  %1181 = vst [vmem:[%s3 + $0x48] sm:$0xf] %v1053
  %1182 = vst [vmem:[%s3 + $0x4c] sm:$0xf] %v1054
  %1183 = vst [vmem:[%s3 + $0x50] sm:$0xf] %v1055
  %1184 = vst [vmem:[%s3 + $0x54] sm:$0xf] %v1056
  %1185 = vst [vmem:[%s3 + $0x58] sm:$0xf] %v1057
  %1186 = vst [vmem:[%s3 + $0x5c] sm:$0xf] %v1058
  %1187 = vst [vmem:[%s3 + $0x60] sm:$0xf] %v1059
  %1188 = vst [vmem:[%s3 + $0x64] sm:$0xf] %v1060
  %1189 = vst [vmem:[%s3 + $0x68] sm:$0xf] %v1061
  %1190 = vst [vmem:[%s3 + $0x6c] sm:$0xf] %v1062
  %1191 = vst [vmem:[%s3 + $0x70] sm:$0xf] %v1063
  %1192 = vst [vmem:[%s3 + $0x74] sm:$0xf] %v1064
  %1193 = vst [vmem:[%s3 + $0x78] sm:$0xf] %v1065
  %1194 = vst [vmem:[%s3 + $0x7c] sm:$0xf] %v1066
  %1195 = vst [vmem:[%s3 + $0x80] sm:$0xf] %v1067
  %1196 = vst [vmem:[%s3 + $0x84] sm:$0xf] %v1068
  %1197 = vst [vmem:[%s3 + $0x88] sm:$0xf] %v1069
  %1198 = vst [vmem:[%s3 + $0x8c] sm:$0xf] %v1070
  %1199 = vst [vmem:[%s3 + $0x90] sm:$0xf] %v1071
  %1200 = vst [vmem:[%s3 + $0x94] sm:$0xf] %v1072
  %1201 = vst [vmem:[%s3 + $0x98] sm:$0xf] %v1073
  %1202 = vst [vmem:[%s3 + $0x9c] sm:$0xf] %v1074
  %1203 = vst [vmem:[%s3 + $0xa0] sm:$0xf] %v1075
  %1204 = vst [vmem:[%s3 + $0xa4] sm:$0xf] %v1076
  %1205 = vst [vmem:[%s3 + $0xa8] sm:$0xf] %v1077
  %1206 = vst [vmem:[%s3 + $0xac] sm:$0xf] %v1078
  %1207 = vst [vmem:[%s3 + $0xb0] sm:$0xf] %v1079
  %1208 = vst [vmem:[%s3 + $0xb4] sm:$0xf] %v1080
  %1209 = vst [vmem:[%s3 + $0xb8] sm:$0xf] %v1081
  %1210 = vst [vmem:[%s3 + $0xbc] sm:$0xf] %v1082
  %1211 = vst [vmem:[%s3 + $0xc0] sm:$0xf] %v1083
  %1212 = vst [vmem:[%s3 + $0xc4] sm:$0xf] %v1084
  %1213 = vst [vmem:[%s3 + $0xc8] sm:$0xf] %v1085
  %1214 = vst [vmem:[%s3 + $0xcc] sm:$0xf] %v1086
  %1215 = vst [vmem:[%s3 + $0xd0] sm:$0xf] %v1087
  %1216 = vst [vmem:[%s3 + $0xd4] sm:$0xf] %v1088
  %1217 = vst [vmem:[%s3 + $0xd8] sm:$0xf] %v1089
  %1218 = vst [vmem:[%s3 + $0xdc] sm:$0xf] %v1090
  %1219 = vst [vmem:[%s3 + $0xe0] sm:$0xf] %v1091
  %1220 = vst [vmem:[%s3 + $0xe4] sm:$0xf] %v1092
  %1221 = vst [vmem:[%s3 + $0xe8] sm:$0xf] %v1093
  %1222 = vst [vmem:[%s3 + $0xec] sm:$0xf] %v1094
  %1223 = vst [vmem:[%s3 + $0xf0] sm:$0xf] %v1095
  %1224 = vst [vmem:[%s3 + $0xf4] sm:$0xf] %v1096
  %1225 = vst [vmem:[%s3 + $0xf8] sm:$0xf] %v1097
  %1226 = vst [vmem:[%s3 + $0xfc] sm:$0xf] %v1098
  // Predicated region
  $region14: #{static_heatmap_classifier_forward.3} parent=0 // pred_check
    _
  $region15: #{static_heatmap_classifier_forward.3} parent=0 // pred_check_branch
    %1228 = sbr.rel (0) target = $region17
  $region16: #{static_heatmap_classifier_forward.3} parent=0 // pred_region
    _
  $region17: #{static_heatmap_classifier_forward.3} parent=0 // pred_fallthru
    _
  // Predicated region
  $region18: #{static_heatmap_classifier_forward.3} parent=0 // pred_check
    _
  $region19: #{static_heatmap_classifier_forward.3} parent=0 // pred_check_branch
    %1230 = sbr.rel (0) target = $region21
  $region20: #{static_heatmap_classifier_forward.3} parent=0 // pred_region
    _
  $region21: #{static_heatmap_classifier_forward.3} parent=0 // pred_fallthru
    _

// kernel: static_heatmap_classifier_forward.5
$region0: #{static_heatmap_classifier_forward.5}
  #allocation0 [shape = 'u32[]', space=smem, size = 0x4, offset = 0x4, fixed_abs, tag = 'smem constant byte address 0x4 - core index']
  #allocation1 [shape = 'u32[144,128]{1,0:T(1,128)}', space=vmem, size = 0x12000, scoped, tag = 'internal scratch']
  %s0 = inlined_call_operand.vmem [shape: f32[2,64], index: 0, kind: input, shape index: {}]
  %s1 = inlined_call_operand.vmem [shape: f32[2,64], index: 1, kind: input, shape index: {}]
  %s2 = inlined_call_operand.vmem [shape: bf16[64,128], index: 2, kind: input, shape index: {}]
  %s3 = inlined_call_operand.vmem [shape: bf16[64,128], index: 3, kind: input, shape index: {}]
  %s4 = inlined_call_operand.vmem [shape: f32[1,128], index: 4, kind: input, shape index: {}]
  %s5 = inlined_call_operand.vmem [shape: bf16[128,128], index: 5, kind: input, shape index: {}]
  %s6 = inlined_call_operand.vmem [shape: f32[1,128], index: 6, kind: input, shape index: {}]
  %s7 = inlined_call_operand.hbm [shape: f32[2,128], index: 7, kind: output, shape index: {}]
  %s8 = sld [smem:[#allocation0]]
  $region38: #{static_heatmap_classifier_forward.5} parent=0
    _
  %s10 = ssub.s32 1, %s8
  %s11 = scalar_select 0, %s10, %s8
  $region1: #{static_heatmap_classifier_forward.5} parent=0
    #allocation2 [shape = 'u8[1024]{0}', space=vmem, size = 0x400, scoped, tag = 'output window, operand 0, single buffered']
    #allocation3 [shape = 's32[1]{0}', space=sflag, size = 0x4, scoped, tag = 'scoped memory for static_heatmap_classifier_forward.5']
    %12 = vsyncpa [#allocation3], 0
    // Predicated region
    $region2: #{static_heatmap_classifier_forward.5} parent=1 // pred_check
      _
    $region3: #{static_heatmap_classifier_forward.5} parent=1 // pred_check_branch
      %14 = sbr.rel (0) target = $region5
    $region4: #{static_heatmap_classifier_forward.5} parent=1 // pred_region
      _
    $region5: #{static_heatmap_classifier_forward.5} parent=1 // pred_fallthru
      _
    // Predicated region
    $region6: #{static_heatmap_classifier_forward.5} parent=1 // pred_check
      _
    $region7: #{static_heatmap_classifier_forward.5} parent=1 // pred_check_branch
      %16 = sbr.rel (0) target = $region9
    $region8: #{static_heatmap_classifier_forward.5} parent=1 // pred_region
      _
    $region9: #{static_heatmap_classifier_forward.5} parent=1 // pred_fallthru
      _
    // Predicated region
    $region10: #{static_heatmap_classifier_forward.5} parent=1 // pred_check
      _
    $region11: #{static_heatmap_classifier_forward.5} parent=1 // pred_check_branch
      %18 = sbr.rel (0) target = $region13
    $region12: #{static_heatmap_classifier_forward.5} parent=1 // pred_region
      _
    $region13: #{static_heatmap_classifier_forward.5} parent=1 // pred_fallthru
      _
    // Predicated region
    $region14: #{static_heatmap_classifier_forward.5} parent=1 // pred_check
      _
    $region15: #{static_heatmap_classifier_forward.5} parent=1 // pred_check_branch
      %20 = sbr.rel (0) target = $region17
    $region16: #{static_heatmap_classifier_forward.5} parent=1 // pred_region
      _
    $region17: #{static_heatmap_classifier_forward.5} parent=1 // pred_fallthru
      _
    // Predicated region
    $region18: #{static_heatmap_classifier_forward.5} parent=1 // pred_check
      _
    $region19: #{static_heatmap_classifier_forward.5} parent=1 // pred_check_branch
      %22 = sbr.rel (0) target = $region21
    $region20: #{static_heatmap_classifier_forward.5} parent=1 // pred_region
      _
    $region21: #{static_heatmap_classifier_forward.5} parent=1 // pred_fallthru
      _
    // Predicated region
    $region22: #{static_heatmap_classifier_forward.5} parent=1 // pred_check
      _
    $region23: #{static_heatmap_classifier_forward.5} parent=1 // pred_check_branch
      %24 = sbr.rel (0) target = $region25
    $region24: #{static_heatmap_classifier_forward.5} parent=1 // pred_region
      _
    $region25: #{static_heatmap_classifier_forward.5} parent=1 // pred_fallthru
      _
    // Predicated region
    $region26: #{static_heatmap_classifier_forward.5} parent=1 // pred_check
      _
    $region27: #{static_heatmap_classifier_forward.5} parent=1 // pred_check_branch
      %26 = sbr.rel (0) target = $region29
    $region28: #{static_heatmap_classifier_forward.5} parent=1 // pred_region
      _
    $region29: #{static_heatmap_classifier_forward.5} parent=1 // pred_fallthru
      _
    %v28 = vld [vmem:[%s0] sm:$0x3]
    %v29 = vpack.c.bf16 %v28, %v28
    %v30 = vld [vmem:[%s1] sm:$0x3]
    %v31 = vpack.c.bf16 %v30, %v30
    %v32 = vld [vmem:[%s2] sm:$0xf]
    %v33 = vld [vmem:[%s2 + $0x4] sm:$0xf]
    %v34 = vld [vmem:[%s2 + $0x8] sm:$0xf]
    %v35 = vld [vmem:[%s2 + $0xc] sm:$0xf]
    %v36 = vld [vmem:[%s2 + $0x10] sm:$0xf]
    %v37 = vld [vmem:[%s2 + $0x14] sm:$0xf]
    %v38 = vld [vmem:[%s2 + $0x18] sm:$0xf]
    %v39 = vld [vmem:[%s2 + $0x1c] sm:$0xf]
    %v40 = vld [vmem:[%s3] sm:$0xf]
    %v41 = vld [vmem:[%s3 + $0x4] sm:$0xf]
    %v42 = vld [vmem:[%s3 + $0x8] sm:$0xf]
    %v43 = vld [vmem:[%s3 + $0xc] sm:$0xf]
    %v44 = vld [vmem:[%s3 + $0x10] sm:$0xf]
    %v45 = vld [vmem:[%s3 + $0x14] sm:$0xf]
    %v46 = vld [vmem:[%s3 + $0x18] sm:$0xf]
    %v47 = vld [vmem:[%s3 + $0x1c] sm:$0xf]
    %v56 = vunpack.c.l.b16 %v40
    %v57 = vunpack.c.l.b16 %v41
    %v58 = vunpack.c.l.b16 %v42
    %v59 = vunpack.c.l.b16 %v43
    %v60 = vunpack.c.l.b16 %v44
    %v61 = vunpack.c.l.b16 %v45
    %v62 = vunpack.c.l.b16 %v46
    %v63 = vunpack.c.l.b16 %v47
    %v64 = vpack.c.b16 %v57, %v56
    %v65 = vpack.c.b16 %v59, %v58
    %v66 = vpack.c.b16 %v61, %v60
    %v67 = vpack.c.b16 %v63, %v62
    %vm72 = vcmask 523264
    %v74 = vsel %vm72, %v31, 0
    %76 = vmatprep.subr.bf16.mxu0 0
    %77 = vmatpush1.bf16.msra.mxu0 0
    %78 = vmatprep.subr.bf16.mxu0 0
    %79 = vmatpush1.bf16.msra.mxu0 0
    %80 = vmatprep.subr.bf16.mxu0 0
    %81 = vmatpush1.bf16.msra.mxu0 0
    %82 = vmatprep.subr.bf16.mxu0 0
    %83 = vmatpush1.bf16.msra.mxu0 0
    %84 = vmatprep.subr.bf16.mxu0 0
    %85 = vmatpush1.bf16.msra.mxu0 %v67
    %86 = vmatprep.subr.bf16.mxu0 0
    %87 = vmatpush1.bf16.msra.mxu0 %v66
    %88 = vmatprep.subr.bf16.mxu0 0
    %89 = vmatpush1.bf16.msra.mxu0 %v65
    %90 = vmatprep.subr.bf16.mxu0 0
    %91 = vmatpush1.bf16.msra.mxu0 %v64
    %92 = vmatprep.subr.bf16.mxu0 0
    %93 = vmatpush2.bf16.msra.mxu0 0
    %94 = vmatprep.subr.bf16.mxu0 0
    %95 = vmatpush2.bf16.msra.mxu0 0
    %96 = vmatprep.subr.bf16.mxu0 0
    %97 = vmatpush2.bf16.msra.mxu0 0
    %98 = vmatprep.subr.bf16.mxu0 0
    %99 = vmatpush2.bf16.msra.mxu0 0
    %100 = vmatprep.subr.bf16.mxu0 0
    %101 = vmatpush2.bf16.msra.mxu0 0
    %102 = vmatprep.subr.bf16.mxu0 0
    %103 = vmatpush2.bf16.msra.mxu0 0
    %104 = vmatprep.subr.bf16.mxu0 0
    %105 = vmatpush2.bf16.msra.mxu0 0
    %106 = vmatprep.subr.bf16.mxu0 0
    %107 = vmatpush2.bf16.msra.mxu0 0
    %108 = vmatprep.mubr.bf16.mxu0 0
    %109 = vmatmul.mubr.bf16.gmra.mxu0 %v74
    %v110 = vpop.f32.mrf.mxu0
    %v111 = vadd.f32 0.0, %v110
    %v112 = vpop.f32.mrf.mxu0
    %v113 = vpop.f32.mrf.mxu0
    %v114 = vpop.f32.mrf.mxu0
    %115 = vdwg.mxu0
    %v124 = vunpack.c.l.b16 %v32
    %v125 = vunpack.c.l.b16 %v33
    %v126 = vunpack.c.l.b16 %v34
    %v127 = vunpack.c.l.b16 %v35
    %v128 = vunpack.c.l.b16 %v36
    %v129 = vunpack.c.l.b16 %v37
    %v130 = vunpack.c.l.b16 %v38
    %v131 = vunpack.c.l.b16 %v39
    %v132 = vpack.c.b16 %v125, %v124
    %v133 = vpack.c.b16 %v127, %v126
    %v134 = vpack.c.b16 %v129, %v128
    %v135 = vpack.c.b16 %v131, %v130
    %v141 = vsel %vm72, %v29, 0
    %143 = vmatprep.subr.bf16.mxu0 0
    %144 = vmatpush1.bf16.msra.mxu0 0
    %145 = vmatprep.subr.bf16.mxu0 0
    %146 = vmatpush1.bf16.msra.mxu0 0
    %147 = vmatprep.subr.bf16.mxu0 0
    %148 = vmatpush1.bf16.msra.mxu0 0
    %149 = vmatprep.subr.bf16.mxu0 0
    %150 = vmatpush1.bf16.msra.mxu0 0
    %151 = vmatprep.subr.bf16.mxu0 0
    %152 = vmatpush1.bf16.msra.mxu0 %v135
    %153 = vmatprep.subr.bf16.mxu0 0
    %154 = vmatpush1.bf16.msra.mxu0 %v134
    %155 = vmatprep.subr.bf16.mxu0 0
    %156 = vmatpush1.bf16.msra.mxu0 %v133
    %157 = vmatprep.subr.bf16.mxu0 0
    %158 = vmatpush1.bf16.msra.mxu0 %v132
    %159 = vmatprep.subr.bf16.mxu0 0
    %160 = vmatpush2.bf16.msra.mxu0 0
    %161 = vmatprep.subr.bf16.mxu0 0
    %162 = vmatpush2.bf16.msra.mxu0 0
    %163 = vmatprep.subr.bf16.mxu0 0
    %164 = vmatpush2.bf16.msra.mxu0 0
    %165 = vmatprep.subr.bf16.mxu0 0
    %166 = vmatpush2.bf16.msra.mxu0 0
    %167 = vmatprep.subr.bf16.mxu0 0
    %168 = vmatpush2.bf16.msra.mxu0 0
    %169 = vmatprep.subr.bf16.mxu0 0
    %170 = vmatpush2.bf16.msra.mxu0 0
    %171 = vmatprep.subr.bf16.mxu0 0
    %172 = vmatpush2.bf16.msra.mxu0 0
    %173 = vmatprep.subr.bf16.mxu0 0
    %174 = vmatpush2.bf16.msra.mxu0 0
    %175 = vmatprep.mubr.bf16.mxu0 0
    %176 = vmatmul.mubr.bf16.gmra.mxu0 %v141
    %v177 = vpop.f32.mrf.mxu0
    %v178 = vadd.f32 %v111, %v177
    %v179 = vpop.f32.mrf.mxu0
    %v180 = vpop.f32.mrf.mxu0
    %v181 = vpop.f32.mrf.mxu0
    %182 = vdwg.mxu0
    %v183 = vld [vmem:[%s4] sm:$0x1]
    %v185 = vlaneseq
    %v186 = vshrl.u32 %v185, 7
    %v187 = vsub.s32 0, %v186
    %v188 = vrot.slane %v183, %v187
    %v190 = vadd.f32 %v178, %v188
    %v191 = vmax.f32 %v190, 0.0
    %v192 = vpack.c.bf16 %v191, %v191
    %v193 = vld [vmem:[%s5] sm:$0xf]
    %v194 = vld [vmem:[%s5 + $0x4] sm:$0xf]
    %v195 = vld [vmem:[%s5 + $0x8] sm:$0xf]
    %v196 = vld [vmem:[%s5 + $0xc] sm:$0xf]
    %v197 = vld [vmem:[%s5 + $0x10] sm:$0xf]
    %v198 = vld [vmem:[%s5 + $0x14] sm:$0xf]
    %v199 = vld [vmem:[%s5 + $0x18] sm:$0xf]
    %v200 = vld [vmem:[%s5 + $0x1c] sm:$0xf]
    %v201 = vld [vmem:[%s5 + $0x20] sm:$0xf]
    %v202 = vld [vmem:[%s5 + $0x24] sm:$0xf]
    %v203 = vld [vmem:[%s5 + $0x28] sm:$0xf]
    %v204 = vld [vmem:[%s5 + $0x2c] sm:$0xf]
    %v205 = vld [vmem:[%s5 + $0x30] sm:$0xf]
    %v206 = vld [vmem:[%s5 + $0x34] sm:$0xf]
    %v207 = vld [vmem:[%s5 + $0x38] sm:$0xf]
    %v208 = vld [vmem:[%s5 + $0x3c] sm:$0xf]
    %v209 = vld [vmem:[%s6] sm:$0x1]
    %v211 = vlaneseq
    %v212 = vshrl.u32 %v211, 7
    %v213 = vsub.s32 0, %v212
    %v214 = vrot.slane %v209, %v213
    %v232 = vunpack.c.l.b16 %v193
    %v233 = vunpack.c.l.b16 %v194
    %v234 = vunpack.c.l.b16 %v195
    %v235 = vunpack.c.l.b16 %v196
    %v236 = vunpack.c.l.b16 %v197
    %v237 = vunpack.c.l.b16 %v198
    %v238 = vunpack.c.l.b16 %v199
    %v239 = vunpack.c.l.b16 %v200
    %v240 = vunpack.c.l.b16 %v201
    %v241 = vunpack.c.l.b16 %v202
    %v242 = vunpack.c.l.b16 %v203
    %v243 = vunpack.c.l.b16 %v204
    %v244 = vunpack.c.l.b16 %v205
    %v245 = vunpack.c.l.b16 %v206
    %v246 = vunpack.c.l.b16 %v207
    %v247 = vunpack.c.l.b16 %v208
    %v248 = vpack.c.b16 %v233, %v232
    %v249 = vpack.c.b16 %v235, %v234
    %v250 = vpack.c.b16 %v237, %v236
    %v251 = vpack.c.b16 %v239, %v238
    %v252 = vpack.c.b16 %v241, %v240
    %v253 = vpack.c.b16 %v243, %v242
    %v254 = vpack.c.b16 %v245, %v244
    %v255 = vpack.c.b16 %v247, %v246
    %264 = vmatprep.subr.bf16.mxu0 0
    %265 = vmatpush1.bf16.msra.mxu0 %v255
    %266 = vmatprep.subr.bf16.mxu0 0
    %267 = vmatpush1.bf16.msra.mxu0 %v254
    %268 = vmatprep.subr.bf16.mxu0 0
    %269 = vmatpush1.bf16.msra.mxu0 %v253
    %270 = vmatprep.subr.bf16.mxu0 0
    %271 = vmatpush1.bf16.msra.mxu0 %v252
    %272 = vmatprep.subr.bf16.mxu0 0
    %273 = vmatpush1.bf16.msra.mxu0 %v251
    %274 = vmatprep.subr.bf16.mxu0 0
    %275 = vmatpush1.bf16.msra.mxu0 %v250
    %276 = vmatprep.subr.bf16.mxu0 0
    %277 = vmatpush1.bf16.msra.mxu0 %v249
    %278 = vmatprep.subr.bf16.mxu0 0
    %279 = vmatpush1.bf16.msra.mxu0 %v248
    %280 = vmatprep.subr.bf16.mxu0 0
    %281 = vmatpush2.bf16.msra.mxu0 0
    %282 = vmatprep.subr.bf16.mxu0 0
    %283 = vmatpush2.bf16.msra.mxu0 0
    %284 = vmatprep.subr.bf16.mxu0 0
    %285 = vmatpush2.bf16.msra.mxu0 0
    %286 = vmatprep.subr.bf16.mxu0 0
    %287 = vmatpush2.bf16.msra.mxu0 0
    %288 = vmatprep.subr.bf16.mxu0 0
    %289 = vmatpush2.bf16.msra.mxu0 0
    %290 = vmatprep.subr.bf16.mxu0 0
    %291 = vmatpush2.bf16.msra.mxu0 0
    %292 = vmatprep.subr.bf16.mxu0 0
    %293 = vmatpush2.bf16.msra.mxu0 0
    %294 = vmatprep.subr.bf16.mxu0 0
    %295 = vmatpush2.bf16.msra.mxu0 0
    %296 = vmatprep.mubr.bf16.mxu0 0
    %297 = vmatmul.mubr.bf16.gmra.mxu0 %v192
    %v298 = vpop.f32.mrf.mxu0
    %v299 = vadd.f32 %v214, %v298
    %v300 = vpop.f32.mrf.mxu0
    %v301 = vpop.f32.mrf.mxu0
    %v302 = vpop.f32.mrf.mxu0
    %303 = vdwg.mxu0
    %304 = vst [vmem:[#allocation2] sm:$0x3] %v299
    // Predicated region
    $region30: #{static_heatmap_classifier_forward.5} parent=1 // pred_check
      _
    $region31: #{static_heatmap_classifier_forward.5} parent=1 // pred_check_branch
      %306 = sbr.rel (0) target = $region33
    $region32: #{static_heatmap_classifier_forward.5} parent=1 // pred_region
      %s308 = ssub.s32 32, 32
      %309 = vsyncadd [#allocation3], %s308
      %s311 = sshll.u32 [#allocation2], 4
      %s312 = int_to_ptr.vmem [resolvable:$true] %s311
      %314 = dma.vmem_to_hbm [thread:$0]  %s312, 32, %s7, [#allocation3]
    $region33: #{static_heatmap_classifier_forward.5} parent=1 // pred_fallthru
      _
    // Predicated region
    $region34: #{static_heatmap_classifier_forward.5} parent=1 // pred_check
      _
    $region35: #{static_heatmap_classifier_forward.5} parent=1 // pred_check_branch
      %316 = sbr.rel (0) target = $region37
    $region36: #{static_heatmap_classifier_forward.5} parent=1 // pred_region
      %317 = dma.done [#allocation3], 32
    $region37: #{static_heatmap_classifier_forward.5} parent=1 // pred_fallthru
      _
    %318 = vsyncpa [#allocation3], 1

</llo_original>
